<compile_context>
chip_gen: v7x
topology: tpu7x:2x2x1
jax: 0.10.0
libtpu: 0.0.40
codegen_flags: <defaults>
</compile_context>

<pallas_src>
import jax
import jax.numpy as jnp
import numpy as np
from jax import lax
from jax.experimental import pallas as pl
from jax.experimental.pallas import tpu as pltpu

EMB = 40      # emb_size
KW1 = 25      # conv1 kernel (1, 25)
KH2 = 14      # conv2 kernel (14, 1)
POOL = 75     # avgpool window (1, 75)
PSTR = 15     # avgpool stride (1, 15)
BN_EPS = 1e-5


def _patch_embed_kernel(x_ref, w_ref, b_ref, pool_ref, wproj_ref, out_ref, cols_ref):
    # x_ref    : (1, H, N + KW1 - 1)  f32 batch-in-lane input slab (+ zero halo), N = Bb*W
    # w_ref    : (H2E_pad, K)         bf16 fused conv1∘conv2∘BN banded weight, K = KW1*H
    # b_ref    : (H2E_pad, 2)         f32: col 0 fused conv/BN bias, col 1 projection bias
    # pool_ref : (N, Bb*Wp)           bf16 block-diagonal banded 1/75 avg-pool matrix
    # wproj_ref: (H2E_pad, H2E_pad)   bf16 block-diagonal 1x1 projection weight
    # out_ref  : (1, H2E_pad, Bb*Wp)  f32 lane-dense channel-major output slab
    # cols_ref : (K, N)               bf16 VMEM scratch holding the im2col for this block
    H = x_ref.shape[1]
    N = cols_ref.shape[1]

    x = x_ref[0]                                         # (H, N + KW1 - 1)
    # im2col built ONCE per grid step: KW1 bulk lane-shifted slices of the whole slab,
    # cast to bf16 and stored into scratch: cols[kw*H + h, n] = x[h, n + kw].
    for kw in range(KW1):                                # static unroll (structural, 25 iters)
        cols_ref[pl.ds(kw * H, H), :] = x[:, kw:kw + N].astype(jnp.bfloat16)

    # Fused conv1 -> conv2 -> BatchNorm: one bf16 MXU matmul (f32 accumulate) + one bias add.
    y = jnp.dot(w_ref[...], cols_ref[...], preferred_element_type=jnp.float32)
    y = y + b_ref[:, 0:1]                                # (H2E_pad, N)
    # ELU(alpha=1); exp only on the (clamped) negative branch.
    y = jnp.where(y > 0, y, jnp.exp(jnp.minimum(y, 0.0)) - 1.0)
    # AvgPool2d((1,75),(1,15)) as one matmul against the banded 1/75 matrix (zero rows drop
    # the per-sample halo/garbage columns with w >= Wo).
    pooled = jnp.dot(y.astype(jnp.bfloat16), pool_ref[...],
                     preferred_element_type=jnp.float32)  # (H2E_pad, Bb*Wp)
    # TODO(synk): Dropout(0.5) is an inference no-op; training-mode dropout not implemented.
    # 1x1 projection as a block-diagonal matmul + bias; single lane-dense store per step.
    out_ref[0] = jnp.dot(wproj_ref[...], pooled.astype(jnp.bfloat16),
                         preferred_element_type=jnp.float32) + b_ref[:, 1:2]


def _fold_params(params, H, H2):
    """Fold conv1∘conv2∘BN into one banded weight + bias; build the block-diag projection."""
    H2E = H2 * EMB
    H2E_pad = int(pl.cdiv(H2E, 128)) * 128               # full MXU/vreg row tiles
    K = KW1 * H

    w1 = params["w1"][:, 0, 0, :]                        # (EMB, KW1)        c, kw
    w2 = params["w2"][:, :, :, 0]                        # (EMB, EMB, KH2)   e, c, kh
    weff = jnp.einsum("ech,cw->ehw", w2, w1)             # (EMB, KH2, KW1)
    beff = params["b2"] + jnp.einsum("ech,c->e", w2, params["b1"])
    scale = params["bn_gamma"] / jnp.sqrt(params["bn_var"] + BN_EPS)
    shift = params["bn_beta"] - params["bn_mean"] * scale
    weff = weff * scale[:, None, None]
    beff = beff * scale + shift

    # Banded weight: W_big[h2*EMB + e, kw*H + h] = weff[e, h - h2, kw] for h2 <= h < h2 + KH2.
    weff_t = jnp.transpose(weff, (0, 2, 1))              # (EMB, KW1, KH2)
    w4 = jnp.zeros((H2, EMB, KW1, H), jnp.float32)
    for h2 in range(H2):
        w4 = w4.at[h2, :, :, h2:h2 + KH2].set(weff_t)
    w_big = jnp.zeros((H2E_pad, K), jnp.float32).at[:H2E].set(w4.reshape(H2E, K))

    wproj = jnp.zeros((H2E_pad, H2E_pad), jnp.float32)
    wproj = wproj.at[:H2E, :H2E].set(
        jnp.kron(jnp.eye(H2, dtype=jnp.float32), params["wp"][:, :, 0, 0]))

    biases = jnp.zeros((H2E_pad, 2), jnp.float32)
    biases = biases.at[:H2E, 0].set(jnp.tile(beff, H2))
    biases = biases.at[:H2E, 1].set(jnp.tile(params["bp"], H2))
    return w_big.astype(jnp.bfloat16), biases, wproj.astype(jnp.bfloat16), H2E, H2E_pad


def _pool_matrix(W, Wp, Bb):
    """Block-diagonal (Bb*W, Bb*Wp) banded averaging matrix (zero rows for w >= Wo)."""
    wi = jnp.arange(W)[:, None]
    pi = jnp.arange(Wp)[None, :]
    p1 = (((wi >= pi * PSTR) & (wi < pi * PSTR + POOL)).astype(jnp.float32) / float(POOL))
    return jnp.kron(jnp.eye(Bb, dtype=jnp.float32), p1).astype(jnp.bfloat16)


def _pick_batch_block(B, H, W, Wp, H2E_pad, K):
    """Largest Bb whose working set stays well inside every generation's scoped VMEM."""
    # per-sample bytes: 2x f32 input slab (double-buffered) + bf16 im2col cols
    #                   + f32 y intermediate + 2x f32 output columns (double-buffered)
    per_sample = 2 * (H * W * 4) + K * W * 2 + H2E_pad * W * 4 + 2 * (H2E_pad * Wp * 4)
    resident = 2 * (H2E_pad * K + H2E_pad * H2E_pad) * 2         # bf16 params, double-buffered
    budget = 8 << 20          # < v5e's 16 MiB default scoped limit; tiny vs v7x's 64 MiB VMEM
    cap = max(1, (budget - resident) // max(1, per_sample))
    # Keep >= 2 grid blocks when B >= 2 so both v7x TensorCores (megacore) get equal work.
    return int(max(1, min(cap, pl.cdiv(B, 2))))


def patch_embedding(x_nchw, params, batch_block=None):
    B, C, H, W = x_nchw.shape
    assert C == 1
    Wo = W - (KW1 - 1)
    H2 = H - (KH2 - 1)
    assert H2 >= 1 and Wo >= POOL, "input too small for this module"
    Wp = (Wo - POOL) // PSTR + 1
    K = KW1 * H

    w_big, biases, wproj, H2E, H2E_pad = _fold_params(params, H, H2)

    Bb = int(batch_block) if batch_block is not None else _pick_batch_block(
        B, H, W, Wp, H2E_pad, K)
    nb = int(pl.cdiv(B, Bb))
    Bpad = nb * Bb
    N = Bb * W                 # matmul lane (N) dimension per grid step
    NW = N + KW1 - 1           # input slab width incl. zero halo for the lane-shifted slices
    NWp = Bb * Wp              # lane width of the output slab per grid step

    pool_big = _pool_matrix(W, Wp, Bb)

    # Batch-in-lane input layout (pure XLA layout glue, one-time):
    #   x_grp[g, h, bb*W + w] = x[g*Bb + bb, 0, h, w], plus a KW1-1 zero halo on the lane dim.
    x2 = x_nchw[:, 0, :, :]
    if Bpad != B:
        x2 = jnp.pad(x2, ((0, Bpad - B), (0, 0), (0, 0)))
    x_grp = x2.reshape(nb, Bb, H, W).transpose(0, 2, 1, 3).reshape(nb, H, N)
    x_grp = jnp.pad(x_grp, ((0, 0), (0, 0), (0, KW1 - 1)))

    out_cf = pl.pallas_call(
        _patch_embed_kernel,
        out_shape=jax.ShapeDtypeStruct((nb, H2E_pad, NWp), jnp.float32),
        grid=(nb,),
        in_specs=[
            pl.BlockSpec((1, H, NW), lambda g: (g, 0, 0)),
            pl.BlockSpec((H2E_pad, K), lambda g: (0, 0)),       # resident params: constant
            pl.BlockSpec((H2E_pad, 2), lambda g: (0, 0)),       # index_maps -> DMA'd once
            pl.BlockSpec((N, NWp), lambda g: (0, 0)),
            pl.BlockSpec((H2E_pad, H2E_pad), lambda g: (0, 0)),
        ],
        out_specs=pl.BlockSpec((1, H2E_pad, NWp), lambda g: (g, 0, 0)),
        scratch_shapes=[pltpu.VMEM((K, N), jnp.bfloat16)],
        compiler_params=pltpu.CompilerParams(dimension_semantics=("parallel",)),
    )(x_grp, w_big, biases, pool_big, wproj)

    # PyTorch: x.permute(0, 2, 3, 1).reshape(bs, -1, emb_size) -- pure layout glue outside.
    out = out_cf[:, :H2E, :].reshape(nb, H2, EMB, Bb, Wp)
    out = jnp.transpose(out, (0, 3, 1, 4, 2)).reshape(Bpad, H2 * Wp, EMB)
    return out[:B]


def init_params(key):
    ks = jax.random.split(key, 10)
    p = {}
    p["w1"] = 0.1 * jax.random.normal(ks[0], (EMB, 1, 1, KW1), jnp.float32)
    p["b1"] = 0.05 * jax.random.normal(ks[1], (EMB,), jnp.float32)
    p["w2"] = 0.05 * jax.random.normal(ks[2], (EMB, EMB, KH2, 1), jnp.float32)
    p["b2"] = 0.05 * jax.random.normal(ks[3], (EMB,), jnp.float32)
    p["bn_gamma"] = 1.0 + 0.1 * jax.random.normal(ks[4], (EMB,), jnp.float32)
    p["bn_beta"] = 0.1 * jax.random.normal(ks[5], (EMB,), jnp.float32)
    p["bn_mean"] = 0.1 * jax.random.normal(ks[6], (EMB,), jnp.float32)
    p["bn_var"] = 1.0 + 0.1 * jnp.abs(jax.random.normal(ks[7], (EMB,), jnp.float32))
    p["wp"] = 0.1 * jax.random.normal(ks[8], (EMB, EMB, 1, 1), jnp.float32)
    p["bp"] = 0.05 * jax.random.normal(ks[9], (EMB,), jnp.float32)
    return p


def reference(x_nchw, p):
    """Pure-JAX (XLA) re-implementation of the PyTorch forward (eval mode)."""
    dn = ("NCHW", "OIHW", "NCHW")
    y = lax.conv_general_dilated(x_nchw, p["w1"], (1, 1), "VALID", dimension_numbers=dn)
    y = y + p["b1"][None, :, None, None]
    y = lax.conv_general_dilated(y, p["w2"], (1, 1), "VALID", dimension_numbers=dn)
    y = y + p["b2"][None, :, None, None]
    scale = p["bn_gamma"] / jnp.sqrt(p["bn_var"] + BN_EPS)
    y = (y - p["bn_mean"][None, :, None, None]) * scale[None, :, None, None] \
        + p["bn_beta"][None, :, None, None]
    y = jnp.where(y > 0, y, jnp.exp(jnp.minimum(y, 0.0)) - 1.0)            # ELU(alpha=1)
    y = lax.reduce_window(y, 0.0, lax.add, (1, 1, 1, POOL), (1, 1, 1, PSTR), "VALID") / POOL
    y = lax.conv_general_dilated(y, p["wp"], (1, 1), "VALID", dimension_numbers=dn)
    y = y + p["bp"][None, :, None, None]
    B = x_nchw.shape[0]
    return jnp.transpose(y, (0, 2, 3, 1)).reshape(B, -1, EMB)


if __name__ == "__main__":
    key = jax.random.PRNGKey(0)
    kx, kp = jax.random.split(key)

    # Small NCHW input consistent with the module: H >= 14, W >= 25 + 75 - 1.
    B, H, W = 2, 16, 120
    x = jax.random.normal(kx, (B, 1, H, W), jnp.float32)
    params = init_params(kp)

    out = jax.block_until_ready(patch_embedding(x, params))                # (2, 6, 40)
    ref = jax.block_until_ready(reference(x, params))
    assert out.shape == ref.shape, (out.shape, ref.shape)
    # Tolerance covers bf16 MXU operands with f32 accumulation (and the default reduced
    # precision of the XLA f32 reference path); a layout/fusion bug would exceed it by
    # orders of magnitude.
    np.testing.assert_allclose(np.asarray(out), np.asarray(ref), rtol=3e-2, atol=3e-2)
    print("KERNEL_OK")
</pallas_src>

<mosaic_0001>
module attributes {stable_mosaic.version = 11 : i64} {
  func.func @_patch_embed_kernel(%arg0: i32, %arg1: memref<1x16x144xf32, #tpu.memory_space<vmem>>, %arg2: memref<128x400xbf16, #tpu.memory_space<vmem>>, %arg3: memref<128x2xf32, #tpu.memory_space<vmem>>, %arg4: memref<120x2xbf16, #tpu.memory_space<vmem>>, %arg5: memref<128x128xbf16, #tpu.memory_space<vmem>>, %arg6: memref<1x128x2xf32, #tpu.memory_space<vmem>>, %arg7: memref<400x120xbf16, #tpu.memory_space<vmem>>) attributes {dimension_semantics = [#tpu.dimension_semantics<parallel>], iteration_bounds = array<i64: 2>, scalar_prefetch = 0 : i64, scratch_operands = 1 : i64, tpu.core_type = #tpu.core_type<tc>, window_params = [{transform_indices = @transform_0, window_bounds = array<i64: 1, 16, 144>}, {pipeline_mode = #tpu.pipeline_mode<synchronous>, transform_indices = @transform_1, window_bounds = array<i64: 128, 400>}, {pipeline_mode = #tpu.pipeline_mode<synchronous>, transform_indices = @transform_2, window_bounds = array<i64: 128, 2>}, {pipeline_mode = #tpu.pipeline_mode<synchronous>, transform_indices = @transform_3, window_bounds = array<i64: 120, 2>}, {pipeline_mode = #tpu.pipeline_mode<synchronous>, transform_indices = @transform_4, window_bounds = array<i64: 128, 128>}, {transform_indices = @transform_5, window_bounds = array<i64: 1, 128, 2>}]} {
    %c0 = arith.constant 0 : index
    %c0_0 = arith.constant 0 : index
    %c0_1 = arith.constant 0 : index
    %0 = vector.load %arg1[%c0, %c0_0, %c0_1] : memref<1x16x144xf32, #tpu.memory_space<vmem>>, vector<1x16x144xf32>
    %1 = vector.shape_cast %0 : vector<1x16x144xf32> to vector<16x144xf32>
    %2 = vector.extract_strided_slice %1 {offsets = [0, 0], sizes = [16, 120], strides = [1, 1]} : vector<16x144xf32> to vector<16x120xf32>
    %3 = arith.truncf %2 : vector<16x120xf32> to vector<16x120xbf16>
    %c0_2 = arith.constant 0 : index
    %c0_3 = arith.constant 0 : index
    %4 = vector.load %arg7[%c0_2, %c0_3] : memref<400x120xbf16, #tpu.memory_space<vmem>>, vector<16x120xbf16>
    tpu.vector_store %arg7[%c0_2, %c0_3], %3 {strides = array<i32>} : memref<400x120xbf16, #tpu.memory_space<vmem>>, vector<16x120xbf16>,
    %5 = vector.extract_strided_slice %1 {offsets = [0, 1], sizes = [16, 120], strides = [1, 1]} : vector<16x144xf32> to vector<16x120xf32>
    %6 = arith.truncf %5 : vector<16x120xf32> to vector<16x120xbf16>
    %c16 = arith.constant 16 : index
    %c0_4 = arith.constant 0 : index
    %7 = vector.load %arg7[%c16, %c0_4] : memref<400x120xbf16, #tpu.memory_space<vmem>>, vector<16x120xbf16>
    tpu.vector_store %arg7[%c16, %c0_4], %6 {strides = array<i32>} : memref<400x120xbf16, #tpu.memory_space<vmem>>, vector<16x120xbf16>,
    %8 = vector.extract_strided_slice %1 {offsets = [0, 2], sizes = [16, 120], strides = [1, 1]} : vector<16x144xf32> to vector<16x120xf32>
    %9 = arith.truncf %8 : vector<16x120xf32> to vector<16x120xbf16>
    %c32 = arith.constant 32 : index
    %c0_5 = arith.constant 0 : index
    %10 = vector.load %arg7[%c32, %c0_5] : memref<400x120xbf16, #tpu.memory_space<vmem>>, vector<16x120xbf16>
    tpu.vector_store %arg7[%c32, %c0_5], %9 {strides = array<i32>} : memref<400x120xbf16, #tpu.memory_space<vmem>>, vector<16x120xbf16>,
    %11 = vector.extract_strided_slice %1 {offsets = [0, 3], sizes = [16, 120], strides = [1, 1]} : vector<16x144xf32> to vector<16x120xf32>
    %12 = arith.truncf %11 : vector<16x120xf32> to vector<16x120xbf16>
    %c48 = arith.constant 48 : index
    %c0_6 = arith.constant 0 : index
    %13 = vector.load %arg7[%c48, %c0_6] : memref<400x120xbf16, #tpu.memory_space<vmem>>, vector<16x120xbf16>
    tpu.vector_store %arg7[%c48, %c0_6], %12 {strides = array<i32>} : memref<400x120xbf16, #tpu.memory_space<vmem>>, vector<16x120xbf16>,
    %14 = vector.extract_strided_slice %1 {offsets = [0, 4], sizes = [16, 120], strides = [1, 1]} : vector<16x144xf32> to vector<16x120xf32>
    %15 = arith.truncf %14 : vector<16x120xf32> to vector<16x120xbf16>
    %c64 = arith.constant 64 : index
    %c0_7 = arith.constant 0 : index
    %16 = vector.load %arg7[%c64, %c0_7] : memref<400x120xbf16, #tpu.memory_space<vmem>>, vector<16x120xbf16>
    tpu.vector_store %arg7[%c64, %c0_7], %15 {strides = array<i32>} : memref<400x120xbf16, #tpu.memory_space<vmem>>, vector<16x120xbf16>,
    %17 = vector.extract_strided_slice %1 {offsets = [0, 5], sizes = [16, 120], strides = [1, 1]} : vector<16x144xf32> to vector<16x120xf32>
    %18 = arith.truncf %17 : vector<16x120xf32> to vector<16x120xbf16>
    %c80 = arith.constant 80 : index
    %c0_8 = arith.constant 0 : index
    %19 = vector.load %arg7[%c80, %c0_8] : memref<400x120xbf16, #tpu.memory_space<vmem>>, vector<16x120xbf16>
    tpu.vector_store %arg7[%c80, %c0_8], %18 {strides = array<i32>} : memref<400x120xbf16, #tpu.memory_space<vmem>>, vector<16x120xbf16>,
    %20 = vector.extract_strided_slice %1 {offsets = [0, 6], sizes = [16, 120], strides = [1, 1]} : vector<16x144xf32> to vector<16x120xf32>
    %21 = arith.truncf %20 : vector<16x120xf32> to vector<16x120xbf16>
    %c96 = arith.constant 96 : index
    %c0_9 = arith.constant 0 : index
    %22 = vector.load %arg7[%c96, %c0_9] : memref<400x120xbf16, #tpu.memory_space<vmem>>, vector<16x120xbf16>
    tpu.vector_store %arg7[%c96, %c0_9], %21 {strides = array<i32>} : memref<400x120xbf16, #tpu.memory_space<vmem>>, vector<16x120xbf16>,
    %23 = vector.extract_strided_slice %1 {offsets = [0, 7], sizes = [16, 120], strides = [1, 1]} : vector<16x144xf32> to vector<16x120xf32>
    %24 = arith.truncf %23 : vector<16x120xf32> to vector<16x120xbf16>
    %c112 = arith.constant 112 : index
    %c0_10 = arith.constant 0 : index
    %25 = vector.load %arg7[%c112, %c0_10] : memref<400x120xbf16, #tpu.memory_space<vmem>>, vector<16x120xbf16>
    tpu.vector_store %arg7[%c112, %c0_10], %24 {strides = array<i32>} : memref<400x120xbf16, #tpu.memory_space<vmem>>, vector<16x120xbf16>,
    %26 = vector.extract_strided_slice %1 {offsets = [0, 8], sizes = [16, 120], strides = [1, 1]} : vector<16x144xf32> to vector<16x120xf32>
    %27 = arith.truncf %26 : vector<16x120xf32> to vector<16x120xbf16>
    %c128 = arith.constant 128 : index
    %c0_11 = arith.constant 0 : index
    %28 = vector.load %arg7[%c128, %c0_11] : memref<400x120xbf16, #tpu.memory_space<vmem>>, vector<16x120xbf16>
    tpu.vector_store %arg7[%c128, %c0_11], %27 {strides = array<i32>} : memref<400x120xbf16, #tpu.memory_space<vmem>>, vector<16x120xbf16>,
    %29 = vector.extract_strided_slice %1 {offsets = [0, 9], sizes = [16, 120], strides = [1, 1]} : vector<16x144xf32> to vector<16x120xf32>
    %30 = arith.truncf %29 : vector<16x120xf32> to vector<16x120xbf16>
    %c144 = arith.constant 144 : index
    %c0_12 = arith.constant 0 : index
    %31 = vector.load %arg7[%c144, %c0_12] : memref<400x120xbf16, #tpu.memory_space<vmem>>, vector<16x120xbf16>
    tpu.vector_store %arg7[%c144, %c0_12], %30 {strides = array<i32>} : memref<400x120xbf16, #tpu.memory_space<vmem>>, vector<16x120xbf16>,
    %32 = vector.extract_strided_slice %1 {offsets = [0, 10], sizes = [16, 120], strides = [1, 1]} : vector<16x144xf32> to vector<16x120xf32>
    %33 = arith.truncf %32 : vector<16x120xf32> to vector<16x120xbf16>
    %c160 = arith.constant 160 : index
    %c0_13 = arith.constant 0 : index
    %34 = vector.load %arg7[%c160, %c0_13] : memref<400x120xbf16, #tpu.memory_space<vmem>>, vector<16x120xbf16>
    tpu.vector_store %arg7[%c160, %c0_13], %33 {strides = array<i32>} : memref<400x120xbf16, #tpu.memory_space<vmem>>, vector<16x120xbf16>,
    %35 = vector.extract_strided_slice %1 {offsets = [0, 11], sizes = [16, 120], strides = [1, 1]} : vector<16x144xf32> to vector<16x120xf32>
    %36 = arith.truncf %35 : vector<16x120xf32> to vector<16x120xbf16>
    %c176 = arith.constant 176 : index
    %c0_14 = arith.constant 0 : index
    %37 = vector.load %arg7[%c176, %c0_14] : memref<400x120xbf16, #tpu.memory_space<vmem>>, vector<16x120xbf16>
    tpu.vector_store %arg7[%c176, %c0_14], %36 {strides = array<i32>} : memref<400x120xbf16, #tpu.memory_space<vmem>>, vector<16x120xbf16>,
    %38 = vector.extract_strided_slice %1 {offsets = [0, 12], sizes = [16, 120], strides = [1, 1]} : vector<16x144xf32> to vector<16x120xf32>
    %39 = arith.truncf %38 : vector<16x120xf32> to vector<16x120xbf16>
    %c192 = arith.constant 192 : index
    %c0_15 = arith.constant 0 : index
    %40 = vector.load %arg7[%c192, %c0_15] : memref<400x120xbf16, #tpu.memory_space<vmem>>, vector<16x120xbf16>
    tpu.vector_store %arg7[%c192, %c0_15], %39 {strides = array<i32>} : memref<400x120xbf16, #tpu.memory_space<vmem>>, vector<16x120xbf16>,
    %41 = vector.extract_strided_slice %1 {offsets = [0, 13], sizes = [16, 120], strides = [1, 1]} : vector<16x144xf32> to vector<16x120xf32>
    %42 = arith.truncf %41 : vector<16x120xf32> to vector<16x120xbf16>
    %c208 = arith.constant 208 : index
    %c0_16 = arith.constant 0 : index
    %43 = vector.load %arg7[%c208, %c0_16] : memref<400x120xbf16, #tpu.memory_space<vmem>>, vector<16x120xbf16>
    tpu.vector_store %arg7[%c208, %c0_16], %42 {strides = array<i32>} : memref<400x120xbf16, #tpu.memory_space<vmem>>, vector<16x120xbf16>,
    %44 = vector.extract_strided_slice %1 {offsets = [0, 14], sizes = [16, 120], strides = [1, 1]} : vector<16x144xf32> to vector<16x120xf32>
    %45 = arith.truncf %44 : vector<16x120xf32> to vector<16x120xbf16>
    %c224 = arith.constant 224 : index
    %c0_17 = arith.constant 0 : index
    %46 = vector.load %arg7[%c224, %c0_17] : memref<400x120xbf16, #tpu.memory_space<vmem>>, vector<16x120xbf16>
    tpu.vector_store %arg7[%c224, %c0_17], %45 {strides = array<i32>} : memref<400x120xbf16, #tpu.memory_space<vmem>>, vector<16x120xbf16>,
    %47 = vector.extract_strided_slice %1 {offsets = [0, 15], sizes = [16, 120], strides = [1, 1]} : vector<16x144xf32> to vector<16x120xf32>
    %48 = arith.truncf %47 : vector<16x120xf32> to vector<16x120xbf16>
    %c240 = arith.constant 240 : index
    %c0_18 = arith.constant 0 : index
    %49 = vector.load %arg7[%c240, %c0_18] : memref<400x120xbf16, #tpu.memory_space<vmem>>, vector<16x120xbf16>
    tpu.vector_store %arg7[%c240, %c0_18], %48 {strides = array<i32>} : memref<400x120xbf16, #tpu.memory_space<vmem>>, vector<16x120xbf16>,
    %50 = vector.extract_strided_slice %1 {offsets = [0, 16], sizes = [16, 120], strides = [1, 1]} : vector<16x144xf32> to vector<16x120xf32>
    %51 = arith.truncf %50 : vector<16x120xf32> to vector<16x120xbf16>
    %c256 = arith.constant 256 : index
    %c0_19 = arith.constant 0 : index
    %52 = vector.load %arg7[%c256, %c0_19] : memref<400x120xbf16, #tpu.memory_space<vmem>>, vector<16x120xbf16>
    tpu.vector_store %arg7[%c256, %c0_19], %51 {strides = array<i32>} : memref<400x120xbf16, #tpu.memory_space<vmem>>, vector<16x120xbf16>,
    %53 = vector.extract_strided_slice %1 {offsets = [0, 17], sizes = [16, 120], strides = [1, 1]} : vector<16x144xf32> to vector<16x120xf32>
    %54 = arith.truncf %53 : vector<16x120xf32> to vector<16x120xbf16>
    %c272 = arith.constant 272 : index
    %c0_20 = arith.constant 0 : index
    %55 = vector.load %arg7[%c272, %c0_20] : memref<400x120xbf16, #tpu.memory_space<vmem>>, vector<16x120xbf16>
    tpu.vector_store %arg7[%c272, %c0_20], %54 {strides = array<i32>} : memref<400x120xbf16, #tpu.memory_space<vmem>>, vector<16x120xbf16>,
    %56 = vector.extract_strided_slice %1 {offsets = [0, 18], sizes = [16, 120], strides = [1, 1]} : vector<16x144xf32> to vector<16x120xf32>
    %57 = arith.truncf %56 : vector<16x120xf32> to vector<16x120xbf16>
    %c288 = arith.constant 288 : index
    %c0_21 = arith.constant 0 : index
    %58 = vector.load %arg7[%c288, %c0_21] : memref<400x120xbf16, #tpu.memory_space<vmem>>, vector<16x120xbf16>
    tpu.vector_store %arg7[%c288, %c0_21], %57 {strides = array<i32>} : memref<400x120xbf16, #tpu.memory_space<vmem>>, vector<16x120xbf16>,
    %59 = vector.extract_strided_slice %1 {offsets = [0, 19], sizes = [16, 120], strides = [1, 1]} : vector<16x144xf32> to vector<16x120xf32>
    %60 = arith.truncf %59 : vector<16x120xf32> to vector<16x120xbf16>
    %c304 = arith.constant 304 : index
    %c0_22 = arith.constant 0 : index
    %61 = vector.load %arg7[%c304, %c0_22] : memref<400x120xbf16, #tpu.memory_space<vmem>>, vector<16x120xbf16>
    tpu.vector_store %arg7[%c304, %c0_22], %60 {strides = array<i32>} : memref<400x120xbf16, #tpu.memory_space<vmem>>, vector<16x120xbf16>,
    %62 = vector.extract_strided_slice %1 {offsets = [0, 20], sizes = [16, 120], strides = [1, 1]} : vector<16x144xf32> to vector<16x120xf32>
    %63 = arith.truncf %62 : vector<16x120xf32> to vector<16x120xbf16>
    %c320 = arith.constant 320 : index
    %c0_23 = arith.constant 0 : index
    %64 = vector.load %arg7[%c320, %c0_23] : memref<400x120xbf16, #tpu.memory_space<vmem>>, vector<16x120xbf16>
    tpu.vector_store %arg7[%c320, %c0_23], %63 {strides = array<i32>} : memref<400x120xbf16, #tpu.memory_space<vmem>>, vector<16x120xbf16>,
    %65 = vector.extract_strided_slice %1 {offsets = [0, 21], sizes = [16, 120], strides = [1, 1]} : vector<16x144xf32> to vector<16x120xf32>
    %66 = arith.truncf %65 : vector<16x120xf32> to vector<16x120xbf16>
    %c336 = arith.constant 336 : index
    %c0_24 = arith.constant 0 : index
    %67 = vector.load %arg7[%c336, %c0_24] : memref<400x120xbf16, #tpu.memory_space<vmem>>, vector<16x120xbf16>
    tpu.vector_store %arg7[%c336, %c0_24], %66 {strides = array<i32>} : memref<400x120xbf16, #tpu.memory_space<vmem>>, vector<16x120xbf16>,
    %68 = vector.extract_strided_slice %1 {offsets = [0, 22], sizes = [16, 120], strides = [1, 1]} : vector<16x144xf32> to vector<16x120xf32>
    %69 = arith.truncf %68 : vector<16x120xf32> to vector<16x120xbf16>
    %c352 = arith.constant 352 : index
    %c0_25 = arith.constant 0 : index
    %70 = vector.load %arg7[%c352, %c0_25] : memref<400x120xbf16, #tpu.memory_space<vmem>>, vector<16x120xbf16>
    tpu.vector_store %arg7[%c352, %c0_25], %69 {strides = array<i32>} : memref<400x120xbf16, #tpu.memory_space<vmem>>, vector<16x120xbf16>,
    %71 = vector.extract_strided_slice %1 {offsets = [0, 23], sizes = [16, 120], strides = [1, 1]} : vector<16x144xf32> to vector<16x120xf32>
    %72 = arith.truncf %71 : vector<16x120xf32> to vector<16x120xbf16>
    %c368 = arith.constant 368 : index
    %c0_26 = arith.constant 0 : index
    %73 = vector.load %arg7[%c368, %c0_26] : memref<400x120xbf16, #tpu.memory_space<vmem>>, vector<16x120xbf16>
    tpu.vector_store %arg7[%c368, %c0_26], %72 {strides = array<i32>} : memref<400x120xbf16, #tpu.memory_space<vmem>>, vector<16x120xbf16>,
    %74 = vector.extract_strided_slice %1 {offsets = [0, 24], sizes = [16, 120], strides = [1, 1]} : vector<16x144xf32> to vector<16x120xf32>
    %75 = arith.truncf %74 : vector<16x120xf32> to vector<16x120xbf16>
    %c384 = arith.constant 384 : index
    %c0_27 = arith.constant 0 : index
    %76 = vector.load %arg7[%c384, %c0_27] : memref<400x120xbf16, #tpu.memory_space<vmem>>, vector<16x120xbf16>
    tpu.vector_store %arg7[%c384, %c0_27], %75 {strides = array<i32>} : memref<400x120xbf16, #tpu.memory_space<vmem>>, vector<16x120xbf16>,
    %c0_28 = arith.constant 0 : index
    %c0_29 = arith.constant 0 : index
    %77 = vector.load %arg2[%c0_28, %c0_29] : memref<128x400xbf16, #tpu.memory_space<vmem>>, vector<128x400xbf16>
    %c0_30 = arith.constant 0 : index
    %c0_31 = arith.constant 0 : index
    %78 = vector.load %arg7[%c0_30, %c0_31] : memref<400x120xbf16, #tpu.memory_space<vmem>>, vector<400x120xbf16>
    %cst = arith.constant dense<0.000000e+00> : vector<128x120xf32>
    %79 = tpu.matmul %77, %78, %cst {dimension_numbers = #tpu.dot_dimension_numbers<[1], [0], [0], [1], [0, 0, 1, 1], [], []>} : vector<128x400xbf16>, vector<400x120xbf16>, vector<128x120xf32> -> vector<128x120xf32>
    %c0_32 = arith.constant 0 : index
    %c0_33 = arith.constant 0 : index
    %80 = vector.load %arg3[%c0_32, %c0_33] : memref<128x2xf32, #tpu.memory_space<vmem>>, vector<128x1xf32>
    %81 = vector.broadcast %80 : vector<128x1xf32> to vector<128x120xf32>
    %82 = arith.addf %79, %81 : vector<128x120xf32>
    %cst_34 = arith.constant 0.000000e+00 : f32
    %83 = vector.broadcast %cst_34 : f32 to vector<128x120xf32>
    %84 = arith.cmpf ogt, %82, %83 : vector<128x120xf32>
    %cst_35 = arith.constant 0.000000e+00 : f32
    %85 = vector.broadcast %cst_35 : f32 to vector<128x120xf32>
    %86 = arith.minimumf %82, %85 : vector<128x120xf32>
    %87 = math.exp %86 : vector<128x120xf32>
    %cst_36 = arith.constant 1.000000e+00 : f32
    %88 = vector.broadcast %cst_36 : f32 to vector<128x120xf32>
    %89 = arith.subf %87, %88 : vector<128x120xf32>
    %90 = arith.select %84, %82, %89 : vector<128x120xi1>, vector<128x120xf32>
    %91 = arith.truncf %90 : vector<128x120xf32> to vector<128x120xbf16>
    %c0_37 = arith.constant 0 : index
    %c0_38 = arith.constant 0 : index
    %92 = vector.load %arg4[%c0_37, %c0_38] : memref<120x2xbf16, #tpu.memory_space<vmem>>, vector<120x2xbf16>
    %cst_39 = arith.constant dense<0.000000e+00> : vector<128x2xf32>
    %93 = tpu.matmul %91, %92, %cst_39 {dimension_numbers = #tpu.dot_dimension_numbers<[1], [0], [0], [1], [0, 0, 1, 1], [], []>} : vector<128x120xbf16>, vector<120x2xbf16>, vector<128x2xf32> -> vector<128x2xf32>
    %c0_40 = arith.constant 0 : index
    %c0_41 = arith.constant 0 : index
    %94 = vector.load %arg5[%c0_40, %c0_41] : memref<128x128xbf16, #tpu.memory_space<vmem>>, vector<128x128xbf16>
    %95 = arith.truncf %93 : vector<128x2xf32> to vector<128x2xbf16>
    %cst_42 = arith.constant dense<0.000000e+00> : vector<128x2xf32>
    %96 = tpu.matmul %94, %95, %cst_42 {dimension_numbers = #tpu.dot_dimension_numbers<[1], [0], [0], [1], [0, 0, 1, 1], [], []>} : vector<128x128xbf16>, vector<128x2xbf16>, vector<128x2xf32> -> vector<128x2xf32>
    %c0_43 = arith.constant 0 : index
    %c1 = arith.constant 1 : index
    %97 = vector.load %arg3[%c0_43, %c1] : memref<128x2xf32, #tpu.memory_space<vmem>>, vector<128x1xf32>
    %98 = vector.broadcast %97 : vector<128x1xf32> to vector<128x2xf32>
    %99 = arith.addf %96, %98 : vector<128x2xf32>
    %c0_44 = arith.constant 0 : index
    %c0_45 = arith.constant 0 : index
    %c0_46 = arith.constant 0 : index
    %100 = vector.load %arg6[%c0_44, %c0_45, %c0_46] : memref<1x128x2xf32, #tpu.memory_space<vmem>>, vector<1x128x2xf32>
    %101 = vector.shape_cast %100 : vector<1x128x2xf32> to vector<128x2xf32>
    %102 = vector.shape_cast %99 : vector<128x2xf32> to vector<1x128x2xf32>
    tpu.vector_store %arg6[%c0_44, %c0_45, %c0_46], %102 {strides = array<i32>} : memref<1x128x2xf32, #tpu.memory_space<vmem>>, vector<1x128x2xf32>,
    return
  }
  func.func @transform_0(%arg0: i32) -> (i32, i32, i32) {
    %c0_i32 = arith.constant 0 : i32
    %c0_i32_0 = arith.constant 0 : i32
    %c0_i32_1 = arith.constant 0 : i32
    return %arg0, %c0_i32, %c0_i32_0 : i32, i32, i32
  }
  func.func @transform_1(%arg0: i32) -> (i32, i32) {
    %c0_i32 = arith.constant 0 : i32
    %c0_i32_0 = arith.constant 0 : i32
    %c0_i32_1 = arith.constant 0 : i32
    return %c0_i32, %c0_i32_0 : i32, i32
  }
  func.func @transform_2(%arg0: i32) -> (i32, i32) {
    %c0_i32 = arith.constant 0 : i32
    %c0_i32_0 = arith.constant 0 : i32
    %c0_i32_1 = arith.constant 0 : i32
    return %c0_i32, %c0_i32_0 : i32, i32
  }
  func.func @transform_3(%arg0: i32) -> (i32, i32) {
    %c0_i32 = arith.constant 0 : i32
    %c0_i32_0 = arith.constant 0 : i32
    %c0_i32_1 = arith.constant 0 : i32
    return %c0_i32, %c0_i32_0 : i32, i32
  }
  func.func @transform_4(%arg0: i32) -> (i32, i32) {
    %c0_i32 = arith.constant 0 : i32
    %c0_i32_0 = arith.constant 0 : i32
    %c0_i32_1 = arith.constant 0 : i32
    return %c0_i32, %c0_i32_0 : i32, i32
  }
  func.func @transform_5(%arg0: i32) -> (i32, i32, i32) {
    %c0_i32 = arith.constant 0 : i32
    %c0_i32_0 = arith.constant 0 : i32
    %c0_i32_1 = arith.constant 0 : i32
    return %arg0, %c0_i32, %c0_i32_0 : i32, i32, i32
  }
}

</mosaic_0001>

<llo_original>
// kernel: tpu_custom_call.1
$region0: #{tpu_custom_call.1}
  #allocation0 [shape = 'u32[]', space=smem, size = 0x4, offset = 0x4, fixed_abs, tag = 'smem constant byte address 0x4 - core index']
  #allocation1 [shape = 'u32[144,128]{1,0:T(1,128)}', space=vmem, size = 0x12000, scoped, tag = 'internal scratch']
  #allocation2 [shape = 'bf16[400,120]{1,0:T(16,128)(2,1)}', space=vmem, size = 0x19000, scoped, tag = 'scratch operand']
  %s0 = inlined_call_operand.vmem [shape: f32[2,16,144], index: 0, kind: input, shape index: {}]
  %s1 = inlined_call_operand.vmem [shape: bf16[128,400], index: 1, kind: input, shape index: {}]
  %s2 = inlined_call_operand.vmem [shape: f32[128,2], index: 2, kind: input, shape index: {}]
  %s3 = inlined_call_operand.vmem [shape: bf16[120,2], index: 3, kind: input, shape index: {}]
  %s4 = inlined_call_operand.vmem [shape: bf16[128,128], index: 4, kind: input, shape index: {}]
  %s5 = inlined_call_operand.vmem [shape: f32[2,128,2], index: 5, kind: output, shape index: {}]
  %s6 = sld [smem:[#allocation0]]
  $region53: #{tpu_custom_call.1} parent=0
    _
  %s8 = ssub.s32 1, %s6
  %s9 = scalar_select 0, %s8, %s6
  loop: start=0, step=1, limit=4
  $region2: #{tpu_custom_call.1} parent=0 // loop_pre_header
    _
  $region3: #{tpu_custom_call.1} parent=0 // loop_header
    %s11 = sphi 0, %s15
    %p12 = scmp.ge.s32.totalorder %s11, 4
    %s21 = sphi 0, %s23
    %s24 = sphi 0, %s21
    %s25 = sphi 0, %s24
    %s41 = sphi 0, %s25
    %s45 = sphi 0, %s45
    %s47 = sphi 0, %s45
    %s48 = sphi 0, %s47
    %s62 = sphi 0, %s48
    %s66 = sphi 0, %s66
    %s68 = sphi 0, %s66
    %s69 = sphi 0, %s68
    %s83 = sphi 0, %s69
    %s87 = sphi 0, %s87
    %s89 = sphi 0, %s87
    %s90 = sphi 0, %s89
    %s104 = sphi 0, %s90
    %s108 = sphi 0, %s108
    %s110 = sphi 0, %s108
    %s111 = sphi 0, %s110
    %s125 = sphi 0, %s111
    %s131 = sphi 0, %s133
    %s134 = sphi 0, %s131
    %s135 = sphi 0, %s134
    %s151 = sphi 0, %s135
  $region4: #{tpu_custom_call.1} parent=0 // loop_header_branch
    %14 = sbr.rel (%p12) target = $region8
  $region5: #{tpu_custom_call.1} parent=0 // loop_body
    %s16 = ssub.s32 %s11, 1
    %s17 = ssub.s32 %s11, 2
    %s18 = sadd.s32 %s11, 1
    %s19 = ssub.s32 %s11, %s18
    %p20 = scmp.eq.s32.totalorder %s19, 0
    %s22 = sadd.s32 %s21, 1
    %s23 = scalar_select %p20, %s21, %s22
    %p26 = pneg %p20
    %p27 = scmp.eq.s32.totalorder %s11, 1
    %p28 = por %p26, %p27
    %p29 = scmp.ne.s32.totalorder %s21, %s24
    %p30 = scmp.eq.s32.totalorder %s11, 0
    %p31 = por %p29, %p30
    %p32 = scmp.ne.s32.totalorder %s21, %s24
    %p33 = scmp.eq.s32.totalorder %s16, 1
    %p34 = por %p32, %p33
    %p35 = scmp.ne.s32.totalorder %s24, %s25
    %p36 = scmp.eq.s32.totalorder %s16, 0
    %p37 = por %p35, %p36
    %p38 = scmp.ne.s32.totalorder %s24, %s25
    %p39 = scmp.eq.s32.totalorder %s17, 1
    %p40 = por %p38, %p39
    %p42 = scmp.ne.s32.totalorder %s25, %s41
    %p43 = scmp.eq.s32.totalorder %s17, 0
    %p44 = por %p42, %p43
    %s46 = sadd.s32 %s45, 1
    %p49 = scmp.eq.s32.totalorder %s11, 1
    %p50 = scmp.ne.s32.totalorder %s45, %s47
    %p51 = scmp.eq.s32.totalorder %s11, 0
    %p52 = por %p50, %p51
    %p53 = scmp.ne.s32.totalorder %s45, %s47
    %p54 = scmp.eq.s32.totalorder %s16, 1
    %p55 = por %p53, %p54
    %p56 = scmp.ne.s32.totalorder %s47, %s48
    %p57 = scmp.eq.s32.totalorder %s16, 0
    %p58 = por %p56, %p57
    %p59 = scmp.ne.s32.totalorder %s47, %s48
    %p60 = scmp.eq.s32.totalorder %s17, 1
    %p61 = por %p59, %p60
    %p63 = scmp.ne.s32.totalorder %s48, %s62
    %p64 = scmp.eq.s32.totalorder %s17, 0
    %p65 = por %p63, %p64
    %s67 = sadd.s32 %s66, 1
    %p70 = scmp.eq.s32.totalorder %s11, 1
    %p71 = scmp.ne.s32.totalorder %s66, %s68
    %p72 = scmp.eq.s32.totalorder %s11, 0
    %p73 = por %p71, %p72
    %p74 = scmp.ne.s32.totalorder %s66, %s68
    %p75 = scmp.eq.s32.totalorder %s16, 1
    %p76 = por %p74, %p75
    %p77 = scmp.ne.s32.totalorder %s68, %s69
    %p78 = scmp.eq.s32.totalorder %s16, 0
    %p79 = por %p77, %p78
    %p80 = scmp.ne.s32.totalorder %s68, %s69
    %p81 = scmp.eq.s32.totalorder %s17, 1
    %p82 = por %p80, %p81
    %p84 = scmp.ne.s32.totalorder %s69, %s83
    %p85 = scmp.eq.s32.totalorder %s17, 0
    %p86 = por %p84, %p85
    %s88 = sadd.s32 %s87, 1
    %p91 = scmp.eq.s32.totalorder %s11, 1
    %p92 = scmp.ne.s32.totalorder %s87, %s89
    %p93 = scmp.eq.s32.totalorder %s11, 0
    %p94 = por %p92, %p93
    %p95 = scmp.ne.s32.totalorder %s87, %s89
    %p96 = scmp.eq.s32.totalorder %s16, 1
    %p97 = por %p95, %p96
    %p98 = scmp.ne.s32.totalorder %s89, %s90
    %p99 = scmp.eq.s32.totalorder %s16, 0
    %p100 = por %p98, %p99
    %p101 = scmp.ne.s32.totalorder %s89, %s90
    %p102 = scmp.eq.s32.totalorder %s17, 1
    %p103 = por %p101, %p102
    %p105 = scmp.ne.s32.totalorder %s90, %s104
    %p106 = scmp.eq.s32.totalorder %s17, 0
    %p107 = por %p105, %p106
    %s109 = sadd.s32 %s108, 1
    %p112 = scmp.eq.s32.totalorder %s11, 1
    %p113 = scmp.ne.s32.totalorder %s108, %s110
    %p114 = scmp.eq.s32.totalorder %s11, 0
    %p115 = por %p113, %p114
    %p116 = scmp.ne.s32.totalorder %s108, %s110
    %p117 = scmp.eq.s32.totalorder %s16, 1
    %p118 = por %p116, %p117
    %p119 = scmp.ne.s32.totalorder %s110, %s111
    %p120 = scmp.eq.s32.totalorder %s16, 0
    %p121 = por %p119, %p120
    %p122 = scmp.ne.s32.totalorder %s110, %s111
    %p123 = scmp.eq.s32.totalorder %s17, 1
    %p124 = por %p122, %p123
    %p126 = scmp.ne.s32.totalorder %s111, %s125
    %p127 = scmp.eq.s32.totalorder %s17, 0
    %p128 = por %p126, %p127
    %s129 = ssub.s32 %s11, %s18
    %p130 = scmp.eq.s32.totalorder %s129, 0
    %s132 = sadd.s32 %s131, 1
    %s133 = scalar_select %p130, %s131, %s132
    %p136 = pneg %p130
    %p137 = scmp.eq.s32.totalorder %s11, 1
    %p138 = por %p136, %p137
    %p139 = scmp.ne.s32.totalorder %s131, %s134
    %p140 = scmp.eq.s32.totalorder %s11, 0
    %p141 = por %p139, %p140
    %p142 = scmp.ne.s32.totalorder %s131, %s134
    %p143 = scmp.eq.s32.totalorder %s16, 1
    %p144 = por %p142, %p143
    %p145 = scmp.ne.s32.totalorder %s134, %s135
    %p146 = scmp.eq.s32.totalorder %s16, 0
    %p147 = por %p145, %p146
    %p148 = scmp.ne.s32.totalorder %s134, %s135
    %p149 = scmp.eq.s32.totalorder %s17, 1
    %p150 = por %p148, %p149
    %p152 = scmp.ne.s32.totalorder %s135, %s151
    %p153 = scmp.eq.s32.totalorder %s17, 0
    %p154 = por %p152, %p153
    %p155 = scmp.le.s32.totalorder 1, %s11
    %p156 = scmp.lt.s32.totalorder %s11, 3
    %p157 = pnand %p155, %p156
    %p158 = pneg %p157
    // Predicated region
    $region9: #{tpu_custom_call.1} parent=5 // pred_check
      _
    $region10: #{tpu_custom_call.1} parent=5 // pred_check_branch
      %160 = sbr.rel (%p157) target = $region12
    $region11: #{tpu_custom_call.1} parent=5 // pred_region
      %s161 = ssub.s32 %s11, 1
      // Predicated region
      $region13: #{tpu_custom_call.1} parent=11 // pred_check
        %p162 = pneg %p58
      $region14: #{tpu_custom_call.1} parent=11 // pred_check_branch
        %164 = sbr.rel (%p162) target = $region16
      $region15: #{tpu_custom_call.1} parent=11 // pred_region
        _
      $region16: #{tpu_custom_call.1} parent=11 // pred_fallthru
        _
      // Predicated region
      $region17: #{tpu_custom_call.1} parent=11 // pred_check
        %p165 = pneg %p79
      $region18: #{tpu_custom_call.1} parent=11 // pred_check_branch
        %167 = sbr.rel (%p165) target = $region20
      $region19: #{tpu_custom_call.1} parent=11 // pred_region
        _
      $region20: #{tpu_custom_call.1} parent=11 // pred_fallthru
        _
      // Predicated region
      $region21: #{tpu_custom_call.1} parent=11 // pred_check
        %p168 = pneg %p100
      $region22: #{tpu_custom_call.1} parent=11 // pred_check_branch
        %170 = sbr.rel (%p168) target = $region24
      $region23: #{tpu_custom_call.1} parent=11 // pred_region
        _
      $region24: #{tpu_custom_call.1} parent=11 // pred_fallthru
        _
      // Predicated region
      $region25: #{tpu_custom_call.1} parent=11 // pred_check
        %p171 = pneg %p121
      $region26: #{tpu_custom_call.1} parent=11 // pred_check_branch
        %173 = sbr.rel (%p171) target = $region28
      $region27: #{tpu_custom_call.1} parent=11 // pred_region
        _
      $region28: #{tpu_custom_call.1} parent=11 // pred_fallthru
        _
    $region12: #{tpu_custom_call.1} parent=5 // pred_fallthru
      _
    %p174 = scmp.lt.s32.totalorder %s11, 2
    // Predicated region
    $region29: #{tpu_custom_call.1} parent=5 // pred_check
      %p175 = pneg %p174
    $region30: #{tpu_custom_call.1} parent=5 // pred_check_branch
      %177 = sbr.rel (%p175) target = $region32
    $region31: #{tpu_custom_call.1} parent=5 // pred_region
      // Predicated region
      $region33: #{tpu_custom_call.1} parent=31 // pred_check
        %p178 = pneg %p31
      $region34: #{tpu_custom_call.1} parent=31 // pred_check_branch
        %180 = sbr.rel (%p178) target = $region36
      $region35: #{tpu_custom_call.1} parent=31 // pred_region
        %p181 = scmp.lt.s32.totalorder %s11, 1
        %s182 = scalar_select %p181, %s11, 1
        %s183 = smul.addr %s182, 4
        %s184 = smul.addr %s183, 8
        %s185 = scalar_lea.vmem %s0, %s184
      $region36: #{tpu_custom_call.1} parent=31 // pred_fallthru
        _
    $region32: #{tpu_custom_call.1} parent=5 // pred_fallthru
      _
    %p186 = scmp.le.s32.totalorder 1, %s11
    %p187 = scmp.lt.s32.totalorder %s11, 3
    %p188 = pnand %p186, %p187
    %p189 = pneg %p188
    // Predicated region
    $region37: #{tpu_custom_call.1} parent=5 // pred_check
      _
    $region38: #{tpu_custom_call.1} parent=5 // pred_check_branch
      %191 = sbr.rel (%p188) target = $region40
    $region39: #{tpu_custom_call.1} parent=5 // pred_region
      %s192 = ssub.s32 %s11, 1
      %p193 = scmp.lt.s32.totalorder %s16, 1
      %s194 = scalar_select %p193, %s16, 1
      %s195 = smul.addr %s194, 4
      %s196 = smul.addr %s195, 8
      %s197 = scalar_lea.vmem %s0, %s196
      %p198 = pneg %p37
      %p199 = pneg %p34
      %p200 = pneg %p58
      %p201 = pneg %p55
      %p202 = pneg %p79
      %p203 = pneg %p76
      %p204 = pneg %p100
      %p205 = pneg %p97
      %p206 = pneg %p121
      %p207 = pneg %p118
      %p208 = pneg %p147
      %p209 = pneg %p144
      %p210 = scmp.lt.s32.totalorder %s16, 1
      %s211 = scalar_select %p210, %s16, 1
      %s212 = smul.addr %s211, 16
      %s213 = smul.addr %s212, 8
      %s214 = scalar_lea.vmem %s5, %s213
      %p215 = scmp.lt.s32.totalorder %s16, 1
      %s216 = scalar_select %p215, %s16, 1
      %s217 = smul.addr %s216, 4
      %s218 = smul.addr %s217, 8
      %s219 = scalar_lea.vmem %s0, %s218
      %p220 = scmp.lt.s32.totalorder %s16, 1
      %s221 = scalar_select %p220, %s16, 1
      %s222 = smul.addr %s221, 16
      %s223 = smul.addr %s222, 8
      %s224 = scalar_lea.vmem %s5, %s223
      %v226 = vld [vmem:[%s219] sm:$0xff]
      %v227 = vld [vmem:[%s219 + $0x8] sm:$0xff]
      %v228 = vld [vmem:[%s219 + $0x10] sm:$0xff]
      %v229 = vld [vmem:[%s219 + $0x18] sm:$0xff]
      %v230 = vpack.c.bf16 %v228, %v226
      %vm231 = vcmask 982016
      %232 = vst.msk [vmem:[#allocation2] sm:$0xff] %vm231, %v230
      %234 = vrot.lane.b32.xlu0 %v230, 127
      %v235 = vpop.permute.xlu0 %234
      %237 = vst.msk [vmem:[#allocation2 + $0x8] sm:$0xff] %vm231, %v235
      %238 = vrot.lane.b32.xlu0 %v230, 126
      %v239 = vpop.permute.xlu0 %238
      %241 = vst.msk [vmem:[#allocation2 + $0x10] sm:$0xff] %vm231, %v239
      %242 = vrot.lane.b32.xlu0 %v230, 125
      %v243 = vpop.permute.xlu0 %242
      %245 = vst.msk [vmem:[#allocation2 + $0x18] sm:$0xff] %vm231, %v243
      %246 = vrot.lane.b32.xlu0 %v230, 124
      %v247 = vpop.permute.xlu0 %246
      %249 = vst.msk [vmem:[#allocation2 + $0x20] sm:$0xff] %vm231, %v247
      %250 = vrot.lane.b32.xlu0 %v230, 123
      %v251 = vpop.permute.xlu0 %250
      %253 = vst.msk [vmem:[#allocation2 + $0x28] sm:$0xff] %vm231, %v251
      %254 = vrot.lane.b32.xlu0 %v230, 122
      %v255 = vpop.permute.xlu0 %254
      %257 = vst.msk [vmem:[#allocation2 + $0x30] sm:$0xff] %vm231, %v255
      %258 = vrot.lane.b32.xlu0 %v230, 121
      %v259 = vpop.permute.xlu0 %258
      %261 = vst.msk [vmem:[#allocation2 + $0x38] sm:$0xff] %vm231, %v259
      %262 = vrot.lane.b32.xlu0 %v230, 120
      %v263 = vpop.permute.xlu0 %262
      %265 = vst.msk [vmem:[#allocation2 + $0x40] sm:$0xff] %vm231, %v263
      %v266 = vpack.c.bf16 %v229, %v227
      %268 = vrot.lane.b32.xlu0 %v230, 119
      %v269 = vpop.permute.xlu0 %268
      %270 = vrot.lane.b32.xlu0 %v266, 119
      %v271 = vpop.permute.xlu0 %270
      %vm272 = vcmask 973824
      %v273 = vsel %vm272, %v269, %v271
      %275 = vst.msk [vmem:[#allocation2 + $0x48] sm:$0xff] %vm231, %v273
      %276 = vrot.lane.b32.xlu0 %v230, 118
      %v277 = vpop.permute.xlu0 %276
      %278 = vrot.lane.b32.xlu0 %v266, 118
      %v279 = vpop.permute.xlu0 %278
      %vm280 = vcmask 965632
      %v281 = vsel %vm280, %v277, %v279
      %283 = vst.msk [vmem:[#allocation2 + $0x50] sm:$0xff] %vm231, %v281
      %284 = vrot.lane.b32.xlu0 %v230, 117
      %v285 = vpop.permute.xlu0 %284
      %286 = vrot.lane.b32.xlu0 %v266, 117
      %v287 = vpop.permute.xlu0 %286
      %vm288 = vcmask 957440
      %v289 = vsel %vm288, %v285, %v287
      %291 = vst.msk [vmem:[#allocation2 + $0x58] sm:$0xff] %vm231, %v289
      %292 = vrot.lane.b32.xlu0 %v230, 116
      %v293 = vpop.permute.xlu0 %292
      %294 = vrot.lane.b32.xlu0 %v266, 116
      %v295 = vpop.permute.xlu0 %294
      %vm296 = vcmask 949248
      %v297 = vsel %vm296, %v293, %v295
      %299 = vst.msk [vmem:[#allocation2 + $0x60] sm:$0xff] %vm231, %v297
      %300 = vrot.lane.b32.xlu0 %v230, 115
      %v301 = vpop.permute.xlu0 %300
      %302 = vrot.lane.b32.xlu0 %v266, 115
      %v303 = vpop.permute.xlu0 %302
      %vm304 = vcmask 941056
      %v305 = vsel %vm304, %v301, %v303
      %307 = vst.msk [vmem:[#allocation2 + $0x68] sm:$0xff] %vm231, %v305
      %308 = vrot.lane.b32.xlu0 %v230, 114
      %v309 = vpop.permute.xlu0 %308
      %310 = vrot.lane.b32.xlu0 %v266, 114
      %v311 = vpop.permute.xlu0 %310
      %vm312 = vcmask 932864
      %v313 = vsel %vm312, %v309, %v311
      %315 = vst.msk [vmem:[#allocation2 + $0x70] sm:$0xff] %vm231, %v313
      %316 = vrot.lane.b32.xlu0 %v230, 113
      %v317 = vpop.permute.xlu0 %316
      %318 = vrot.lane.b32.xlu0 %v266, 113
      %v319 = vpop.permute.xlu0 %318
      %vm320 = vcmask 924672
      %v321 = vsel %vm320, %v317, %v319
      %323 = vst.msk [vmem:[#allocation2 + $0x78] sm:$0xff] %vm231, %v321
      %324 = vrot.lane.b32.xlu0 %v230, 112
      %v325 = vpop.permute.xlu0 %324
      %326 = vrot.lane.b32.xlu0 %v266, 112
      %v327 = vpop.permute.xlu0 %326
      %vm328 = vcmask 916480
      %v329 = vsel %vm328, %v325, %v327
      %331 = vst.msk [vmem:[#allocation2 + $0x80] sm:$0xff] %vm231, %v329
      %332 = vrot.lane.b32.xlu0 %v230, 111
      %v333 = vpop.permute.xlu0 %332
      %334 = vrot.lane.b32.xlu0 %v266, 111
      %v335 = vpop.permute.xlu0 %334
      %vm336 = vcmask 908288
      %v337 = vsel %vm336, %v333, %v335
      %339 = vst.msk [vmem:[#allocation2 + $0x88] sm:$0xff] %vm231, %v337
      %340 = vrot.lane.b32.xlu0 %v230, 110
      %v341 = vpop.permute.xlu0 %340
      %342 = vrot.lane.b32.xlu0 %v266, 110
      %v343 = vpop.permute.xlu0 %342
      %vm344 = vcmask 900096
      %v345 = vsel %vm344, %v341, %v343
      %347 = vst.msk [vmem:[#allocation2 + $0x90] sm:$0xff] %vm231, %v345
      %348 = vrot.lane.b32.xlu0 %v230, 109
      %v349 = vpop.permute.xlu0 %348
      %350 = vrot.lane.b32.xlu0 %v266, 109
      %v351 = vpop.permute.xlu0 %350
      %vm352 = vcmask 891904
      %v353 = vsel %vm352, %v349, %v351
      %355 = vst.msk [vmem:[#allocation2 + $0x98] sm:$0xff] %vm231, %v353
      %356 = vrot.lane.b32.xlu0 %v230, 108
      %v357 = vpop.permute.xlu0 %356
      %358 = vrot.lane.b32.xlu0 %v266, 108
      %v359 = vpop.permute.xlu0 %358
      %vm360 = vcmask 883712
      %v361 = vsel %vm360, %v357, %v359
      %363 = vst.msk [vmem:[#allocation2 + $0xa0] sm:$0xff] %vm231, %v361
      %364 = vrot.lane.b32.xlu0 %v230, 107
      %v365 = vpop.permute.xlu0 %364
      %366 = vrot.lane.b32.xlu0 %v266, 107
      %v367 = vpop.permute.xlu0 %366
      %vm368 = vcmask 875520
      %v369 = vsel %vm368, %v365, %v367
      %371 = vst.msk [vmem:[#allocation2 + $0xa8] sm:$0xff] %vm231, %v369
      %372 = vrot.lane.b32.xlu0 %v230, 106
      %v373 = vpop.permute.xlu0 %372
      %374 = vrot.lane.b32.xlu0 %v266, 106
      %v375 = vpop.permute.xlu0 %374
      %vm376 = vcmask 867328
      %v377 = vsel %vm376, %v373, %v375
      %379 = vst.msk [vmem:[#allocation2 + $0xb0] sm:$0xff] %vm231, %v377
      %380 = vrot.lane.b32.xlu0 %v230, 105
      %v381 = vpop.permute.xlu0 %380
      %382 = vrot.lane.b32.xlu0 %v266, 105
      %v383 = vpop.permute.xlu0 %382
      %vm384 = vcmask 859136
      %v385 = vsel %vm384, %v381, %v383
      %387 = vst.msk [vmem:[#allocation2 + $0xb8] sm:$0xff] %vm231, %v385
      %388 = vrot.lane.b32.xlu0 %v230, 104
      %v389 = vpop.permute.xlu0 %388
      %390 = vrot.lane.b32.xlu0 %v266, 104
      %v391 = vpop.permute.xlu0 %390
      %vm392 = vcmask 850944
      %v393 = vsel %vm392, %v389, %v391
      %395 = vst.msk [vmem:[#allocation2 + $0xc0] sm:$0xff] %vm231, %v393
      %v396 = vld [vmem:[%s1] sm:$0xff]
      %v397 = vld [vmem:[%s1 + $0x8] sm:$0xff]
      %v398 = vld [vmem:[%s1 + $0x10] sm:$0xff]
      %v399 = vld [vmem:[%s1 + $0x18] sm:$0xff]
      %v400 = vld [vmem:[%s1 + $0x20] sm:$0xff]
      %v401 = vld [vmem:[%s1 + $0x28] sm:$0xff]
      %v402 = vld [vmem:[%s1 + $0x30] sm:$0xff]
      %v403 = vld [vmem:[%s1 + $0x38] sm:$0xff]
      %v404 = vld [vmem:[%s1 + $0x40] sm:$0xff]
      %v405 = vld [vmem:[%s1 + $0x48] sm:$0xff]
      %v406 = vld [vmem:[%s1 + $0x50] sm:$0xff]
      %v407 = vld [vmem:[%s1 + $0x58] sm:$0xff]
      %v408 = vld [vmem:[%s1 + $0x60] sm:$0xff]
      %v409 = vld [vmem:[%s1 + $0x68] sm:$0xff]
      %v410 = vld [vmem:[%s1 + $0x70] sm:$0xff]
      %v411 = vld [vmem:[%s1 + $0x78] sm:$0xff]
      %v412 = vld [vmem:[%s1 + $0x80] sm:$0xff]
      %v413 = vld [vmem:[%s1 + $0x88] sm:$0xff]
      %v414 = vld [vmem:[%s1 + $0x90] sm:$0xff]
      %v415 = vld [vmem:[%s1 + $0x98] sm:$0xff]
      %v416 = vld [vmem:[%s1 + $0xa0] sm:$0xff]
      %v417 = vld [vmem:[%s1 + $0xa8] sm:$0xff]
      %v418 = vld [vmem:[%s1 + $0xb0] sm:$0xff]
      %v419 = vld [vmem:[%s1 + $0xb8] sm:$0xff]
      %v420 = vld [vmem:[%s1 + $0xc0] sm:$0xff]
      %v421 = vld [vmem:[%s1 + $0xc8] sm:$0xff]
      %v422 = vld [vmem:[%s1 + $0xd0] sm:$0xff]
      %v423 = vld [vmem:[%s1 + $0xd8] sm:$0xff]
      %v424 = vld [vmem:[%s1 + $0xe0] sm:$0xff]
      %v425 = vld [vmem:[%s1 + $0xe8] sm:$0xff]
      %v426 = vld [vmem:[%s1 + $0xf0] sm:$0xff]
      %v427 = vld [vmem:[%s1 + $0xf8] sm:$0xff]
      %v428 = vld [vmem:[#allocation2] sm:$0xff]
      %v429 = vld [vmem:[#allocation2 + $0x8] sm:$0xff]
      %v430 = vld [vmem:[#allocation2 + $0x10] sm:$0xff]
      %v431 = vld [vmem:[#allocation2 + $0x18] sm:$0xff]
      %v432 = vld [vmem:[#allocation2 + $0x20] sm:$0xff]
      %v433 = vld [vmem:[#allocation2 + $0x28] sm:$0xff]
      %v434 = vld [vmem:[#allocation2 + $0x30] sm:$0xff]
      %v435 = vld [vmem:[#allocation2 + $0x38] sm:$0xff]
      %v436 = vld [vmem:[#allocation2 + $0x40] sm:$0xff]
      %v437 = vld [vmem:[#allocation2 + $0x48] sm:$0xff]
      %v438 = vld [vmem:[#allocation2 + $0x50] sm:$0xff]
      %v439 = vld [vmem:[#allocation2 + $0x58] sm:$0xff]
      %v440 = vld [vmem:[#allocation2 + $0x60] sm:$0xff]
      %v441 = vld [vmem:[#allocation2 + $0x68] sm:$0xff]
      %v442 = vld [vmem:[#allocation2 + $0x70] sm:$0xff]
      %v443 = vld [vmem:[#allocation2 + $0x78] sm:$0xff]
      %v444 = vld [vmem:[#allocation2 + $0x80] sm:$0xff]
      %v445 = vld [vmem:[#allocation2 + $0x88] sm:$0xff]
      %v446 = vld [vmem:[#allocation2 + $0x90] sm:$0xff]
      %v447 = vld [vmem:[#allocation2 + $0x98] sm:$0xff]
      %v448 = vld [vmem:[#allocation2 + $0xa0] sm:$0xff]
      %v449 = vld [vmem:[#allocation2 + $0xa8] sm:$0xff]
      %v450 = vld [vmem:[#allocation2 + $0xb0] sm:$0xff]
      %v451 = vld [vmem:[#allocation2 + $0xb8] sm:$0xff]
      %v452 = vld [vmem:[#allocation2 + $0xc0] sm:$0xff]
      %v453 = vld [vmem:[%s2] sm:$0xff]
      %v454 = vld [vmem:[%s2 + $0x8] sm:$0xff]
      %v455 = vld [vmem:[%s2 + $0x10] sm:$0xff]
      %v456 = vld [vmem:[%s2 + $0x18] sm:$0xff]
      %v457 = vld [vmem:[%s2 + $0x20] sm:$0xff]
      %v458 = vld [vmem:[%s2 + $0x28] sm:$0xff]
      %v459 = vld [vmem:[%s2 + $0x30] sm:$0xff]
      %v460 = vld [vmem:[%s2 + $0x38] sm:$0xff]
      %v461 = vld [vmem:[%s2 + $0x40] sm:$0xff]
      %v462 = vld [vmem:[%s2 + $0x48] sm:$0xff]
      %v463 = vld [vmem:[%s2 + $0x50] sm:$0xff]
      %v464 = vld [vmem:[%s2 + $0x58] sm:$0xff]
      %v465 = vld [vmem:[%s2 + $0x60] sm:$0xff]
      %v466 = vld [vmem:[%s2 + $0x68] sm:$0xff]
      %v467 = vld [vmem:[%s2 + $0x70] sm:$0xff]
      %v468 = vld [vmem:[%s2 + $0x78] sm:$0xff]
      %470 = vset.pattern.permute.xlu0 0
      %471 = vperm.xlu0 %470, %v453
      %v472 = vpop.permute.xlu0 %471
      %475 = vset.pattern.permute.xlu0 0
      %476 = vperm.xlu0 %475, %v454
      %v477 = vpop.permute.xlu0 %476
      %480 = vset.pattern.permute.xlu0 0
      %481 = vperm.xlu0 %480, %v455
      %v482 = vpop.permute.xlu0 %481
      %485 = vset.pattern.permute.xlu0 0
      %486 = vperm.xlu0 %485, %v456
      %v487 = vpop.permute.xlu0 %486
      %490 = vset.pattern.permute.xlu0 0
      %491 = vperm.xlu0 %490, %v457
      %v492 = vpop.permute.xlu0 %491
      %495 = vset.pattern.permute.xlu0 0
      %496 = vperm.xlu0 %495, %v458
      %v497 = vpop.permute.xlu0 %496
      %500 = vset.pattern.permute.xlu0 0
      %501 = vperm.xlu0 %500, %v459
      %v502 = vpop.permute.xlu0 %501
      %505 = vset.pattern.permute.xlu0 0
      %506 = vperm.xlu0 %505, %v460
      %v507 = vpop.permute.xlu0 %506
      %510 = vset.pattern.permute.xlu0 0
      %511 = vperm.xlu0 %510, %v461
      %v512 = vpop.permute.xlu0 %511
      %515 = vset.pattern.permute.xlu0 0
      %516 = vperm.xlu0 %515, %v462
      %v517 = vpop.permute.xlu0 %516
      %520 = vset.pattern.permute.xlu0 0
      %521 = vperm.xlu0 %520, %v463
      %v522 = vpop.permute.xlu0 %521
      %525 = vset.pattern.permute.xlu0 0
      %526 = vperm.xlu0 %525, %v464
      %v527 = vpop.permute.xlu0 %526
      %530 = vset.pattern.permute.xlu0 0
      %531 = vperm.xlu0 %530, %v465
      %v532 = vpop.permute.xlu0 %531
      %535 = vset.pattern.permute.xlu0 0
      %536 = vperm.xlu0 %535, %v466
      %v537 = vpop.permute.xlu0 %536
      %540 = vset.pattern.permute.xlu0 0
      %541 = vperm.xlu0 %540, %v467
      %v542 = vpop.permute.xlu0 %541
      %545 = vset.pattern.permute.xlu0 0
      %546 = vperm.xlu0 %545, %v468
      %v547 = vpop.permute.xlu0 %546
      %v581 = vunpack.c.l.b16 %v396
      %v582 = vunpack.c.h.b16 %v396
      %v583 = vunpack.c.l.b16 %v397
      %v584 = vunpack.c.h.b16 %v397
      %v585 = vunpack.c.l.b16 %v398
      %v586 = vunpack.c.h.b16 %v398
      %v587 = vunpack.c.l.b16 %v399
      %v588 = vunpack.c.h.b16 %v399
      %v589 = vunpack.c.l.b16 %v400
      %v590 = vunpack.c.h.b16 %v400
      %v591 = vunpack.c.l.b16 %v401
      %v592 = vunpack.c.h.b16 %v401
      %v593 = vunpack.c.l.b16 %v402
      %v594 = vunpack.c.h.b16 %v402
      %v595 = vunpack.c.l.b16 %v403
      %v596 = vunpack.c.h.b16 %v403
      %v597 = vunpack.c.l.b16 %v404
      %v598 = vunpack.c.h.b16 %v404
      %v599 = vunpack.c.l.b16 %v405
      %v600 = vunpack.c.h.b16 %v405
      %v601 = vunpack.c.l.b16 %v406
      %v602 = vunpack.c.h.b16 %v406
      %v603 = vunpack.c.l.b16 %v407
      %v604 = vunpack.c.h.b16 %v407
      %v605 = vunpack.c.l.b16 %v408
      %v606 = vunpack.c.h.b16 %v408
      %v607 = vunpack.c.l.b16 %v409
      %v608 = vunpack.c.h.b16 %v409
      %v609 = vunpack.c.l.b16 %v410
      %v610 = vunpack.c.h.b16 %v410
      %v611 = vunpack.c.l.b16 %v411
      %v612 = vunpack.c.h.b16 %v411
      %v613 = vunpack.c.l.b16 %v412
      %v614 = vunpack.c.h.b16 %v412
      %v615 = vunpack.c.l.b16 %v413
      %v616 = vunpack.c.h.b16 %v413
      %v617 = vunpack.c.l.b16 %v414
      %v618 = vunpack.c.h.b16 %v414
      %v619 = vunpack.c.l.b16 %v415
      %v620 = vunpack.c.h.b16 %v415
      %v621 = vunpack.c.l.b16 %v416
      %v622 = vunpack.c.h.b16 %v416
      %v623 = vunpack.c.l.b16 %v417
      %v624 = vunpack.c.h.b16 %v417
      %v625 = vunpack.c.l.b16 %v418
      %v626 = vunpack.c.h.b16 %v418
      %v627 = vunpack.c.l.b16 %v419
      %v628 = vunpack.c.h.b16 %v419
      %v629 = vunpack.c.l.b16 %v420
      %v630 = vunpack.c.h.b16 %v420
      %v631 = vunpack.c.l.b16 %v421
      %v632 = vunpack.c.h.b16 %v421
      %v633 = vunpack.c.l.b16 %v422
      %v634 = vunpack.c.h.b16 %v422
      %v635 = vunpack.c.l.b16 %v423
      %v636 = vunpack.c.h.b16 %v423
      %v637 = vunpack.c.l.b16 %v424
      %v638 = vunpack.c.h.b16 %v424
      %v639 = vunpack.c.l.b16 %v425
      %v640 = vunpack.c.h.b16 %v425
      %v641 = vunpack.c.l.b16 %v426
      %v642 = vunpack.c.h.b16 %v426
      %v643 = vunpack.c.l.b16 %v427
      %v644 = vunpack.c.h.b16 %v427
      %v645 = vpack.c.b16 %v585, %v581
      %v646 = vpack.c.b16 %v586, %v582
      %v647 = vpack.c.b16 %v587, %v583
      %v648 = vpack.c.b16 %v588, %v584
      %v649 = vpack.c.b16 %v593, %v589
      %v650 = vpack.c.b16 %v594, %v590
      %v651 = vpack.c.b16 %v595, %v591
      %v652 = vpack.c.b16 %v596, %v592
      %v653 = vpack.c.b16 %v601, %v597
      %v654 = vpack.c.b16 %v602, %v598
      %v655 = vpack.c.b16 %v603, %v599
      %v656 = vpack.c.b16 %v604, %v600
      %v657 = vpack.c.b16 %v609, %v605
      %v658 = vpack.c.b16 %v610, %v606
      %v659 = vpack.c.b16 %v611, %v607
      %v660 = vpack.c.b16 %v612, %v608
      %v661 = vpack.c.b16 %v617, %v613
      %v662 = vpack.c.b16 %v618, %v614
      %v663 = vpack.c.b16 %v619, %v615
      %v664 = vpack.c.b16 %v620, %v616
      %v665 = vpack.c.b16 %v625, %v621
      %v666 = vpack.c.b16 %v626, %v622
      %v667 = vpack.c.b16 %v627, %v623
      %v668 = vpack.c.b16 %v628, %v624
      %v669 = vpack.c.b16 %v633, %v629
      %v670 = vpack.c.b16 %v634, %v630
      %v671 = vpack.c.b16 %v635, %v631
      %v672 = vpack.c.b16 %v636, %v632
      %v673 = vpack.c.b16 %v641, %v637
      %v674 = vpack.c.b16 %v642, %v638
      %v675 = vpack.c.b16 %v643, %v639
      %v676 = vpack.c.b16 %v644, %v640
      %vm701 = vcmask 130048
      %v703 = vsel %vm701, %v648, 0
      %v706 = vsel %vm701, %v652, 0
      %v709 = vsel %vm701, %v656, 0
      %v712 = vsel %vm701, %v660, 0
      %v715 = vsel %vm701, %v664, 0
      %v718 = vsel %vm701, %v668, 0
      %v721 = vsel %vm701, %v672, 0
      %v724 = vsel %vm701, %v676, 0
      %726 = vmatprep.subr.bf16.mxu0 0
      %727 = vmatpush1.bf16.msra.mxu0 %v428
      %728 = vmatprep.subr.bf16.mxu0 0
      %729 = vmatpush1.bf16.msra.mxu0 %v429
      %730 = vmatprep.subr.bf16.mxu0 0
      %731 = vmatpush1.bf16.msra.mxu0 %v430
      %732 = vmatprep.subr.bf16.mxu0 0
      %733 = vmatpush1.bf16.msra.mxu0 %v431
      %734 = vmatprep.subr.bf16.mxu0 0
      %735 = vmatpush1.bf16.msra.mxu0 %v432
      %736 = vmatprep.subr.bf16.mxu0 0
      %737 = vmatpush1.bf16.msra.mxu0 %v433
      %738 = vmatprep.subr.bf16.mxu0 0
      %739 = vmatpush1.bf16.msra.mxu0 %v434
      %740 = vmatprep.subr.bf16.mxu0 0
      %741 = vmatpush1.bf16.msra.mxu0 %v435
      %742 = vmatprep.subr.bf16.mxu0 0
      %743 = vmatpush1.bf16.msra.mxu0 %v436
      %744 = vmatprep.subr.bf16.mxu0 0
      %745 = vmatpush1.bf16.msra.mxu0 %v437
      %746 = vmatprep.subr.bf16.mxu0 0
      %747 = vmatpush1.bf16.msra.mxu0 %v438
      %748 = vmatprep.subr.bf16.mxu0 0
      %749 = vmatpush1.bf16.msra.mxu0 %v439
      %750 = vmatprep.subr.bf16.mxu0 0
      %751 = vmatpush1.bf16.msra.mxu0 %v440
      %752 = vmatprep.subr.bf16.mxu0 0
      %753 = vmatpush1.bf16.msra.mxu0 %v441
      %754 = vmatprep.subr.bf16.mxu0 0
      %755 = vmatpush1.bf16.msra.mxu0 %v442
      %756 = vmatprep.subr.bf16.mxu0 0
      %757 = vmatpush1.bf16.msra.mxu0 %v443
      %758 = vmatprep.mubr.bf16.mxu0 %v646
      %759 = vmatmul.mubr.bf16.gmra.mrb[0].mxu0 %v645
      %v760 = vpop.f32.mrb[0].mxu0
      %v761 = vadd.f32 %v472, %v760
      %v762 = vpop.f32.mrb[0].mxu0
      %v763 = vpop.f32.mrb[0].mxu0
      %v764 = vadd.f32 %v477, %v763
      %v765 = vpop.f32.mrb[0].mxu0
      %766 = vmatprep.mubr.bf16.mxu0 %v650
      %767 = vmatmul.mubr.bf16.gmra.mrb[0].mxu0 %v649
      %v768 = vpop.f32.mrb[0].mxu0
      %v769 = vadd.f32 %v482, %v768
      %v770 = vpop.f32.mrb[0].mxu0
      %v771 = vpop.f32.mrb[0].mxu0
      %v772 = vadd.f32 %v487, %v771
      %v773 = vpop.f32.mrb[0].mxu0
      %774 = vmatprep.mubr.bf16.mxu0 %v654
      %775 = vmatmul.mubr.bf16.gmra.mrb[0].mxu0 %v653
      %v776 = vpop.f32.mrb[0].mxu0
      %v777 = vadd.f32 %v492, %v776
      %v778 = vpop.f32.mrb[0].mxu0
      %v779 = vpop.f32.mrb[0].mxu0
      %v780 = vadd.f32 %v497, %v779
      %v781 = vpop.f32.mrb[0].mxu0
      %782 = vmatprep.mubr.bf16.mxu0 %v658
      %783 = vmatmul.mubr.bf16.gmra.mrb[0].mxu0 %v657
      %v784 = vpop.f32.mrb[0].mxu0
      %v785 = vadd.f32 %v502, %v784
      %v786 = vpop.f32.mrb[0].mxu0
      %v787 = vpop.f32.mrb[0].mxu0
      %v788 = vadd.f32 %v507, %v787
      %v789 = vpop.f32.mrb[0].mxu0
      %790 = vmatprep.mubr.bf16.mxu0 %v662
      %791 = vmatmul.mubr.bf16.gmra.mrb[0].mxu0 %v661
      %v792 = vpop.f32.mrb[0].mxu0
      %v793 = vadd.f32 %v512, %v792
      %v794 = vpop.f32.mrb[0].mxu0
      %v795 = vpop.f32.mrb[0].mxu0
      %v796 = vadd.f32 %v517, %v795
      %v797 = vpop.f32.mrb[0].mxu0
      %798 = vmatprep.mubr.bf16.mxu0 %v666
      %799 = vmatmul.mubr.bf16.gmra.mrb[0].mxu0 %v665
      %v800 = vpop.f32.mrb[0].mxu0
      %v801 = vadd.f32 %v522, %v800
      %v802 = vpop.f32.mrb[0].mxu0
      %v803 = vpop.f32.mrb[0].mxu0
      %v804 = vadd.f32 %v527, %v803
      %v805 = vpop.f32.mrb[0].mxu0
      %806 = vmatprep.mubr.bf16.mxu0 %v670
      %807 = vmatmul.mubr.bf16.gmra.mrb[0].mxu0 %v669
      %v808 = vpop.f32.mrb[0].mxu0
      %v809 = vadd.f32 %v532, %v808
      %v810 = vpop.f32.mrb[0].mxu0
      %v811 = vpop.f32.mrb[0].mxu0
      %v812 = vadd.f32 %v537, %v811
      %v813 = vpop.f32.mrb[0].mxu0
      %814 = vmatprep.mubr.bf16.mxu0 %v674
      %815 = vmatmul.mubr.bf16.gmra.mrb[0].mxu0 %v673
      %v816 = vpop.f32.mrb[0].mxu0
      %v817 = vadd.f32 %v542, %v816
      %v818 = vpop.f32.mrb[0].mxu0
      %v819 = vpop.f32.mrb[0].mxu0
      %v820 = vadd.f32 %v547, %v819
      %v821 = vpop.f32.mrb[0].mxu0
      %822 = vdwg.mxu0
      %823 = vmatprep.subr.bf16.mxu0 0
      %824 = vmatpush1.bf16.msra.mxu0 %v444
      %825 = vmatprep.subr.bf16.mxu0 0
      %826 = vmatpush1.bf16.msra.mxu0 %v445
      %827 = vmatprep.subr.bf16.mxu0 0
      %828 = vmatpush1.bf16.msra.mxu0 %v446
      %829 = vmatprep.subr.bf16.mxu0 0
      %830 = vmatpush1.bf16.msra.mxu0 %v447
      %831 = vmatprep.subr.bf16.mxu0 0
      %832 = vmatpush1.bf16.msra.mxu0 %v448
      %833 = vmatprep.subr.bf16.mxu0 0
      %834 = vmatpush1.bf16.msra.mxu0 %v449
      %835 = vmatprep.subr.bf16.mxu0 0
      %836 = vmatpush1.bf16.msra.mxu0 %v450
      %837 = vmatprep.subr.bf16.mxu0 0
      %838 = vmatpush1.bf16.msra.mxu0 %v451
      %839 = vmatprep.subr.bf16.mxu0 0
      %840 = vmatpush1.bf16.msra.mxu0 %v452
      %841 = vmatprep.subr.bf16.mxu0 0
      %842 = vmatpush1.bf16.msra.mxu0 0
      %843 = vmatprep.subr.bf16.mxu0 0
      %844 = vmatpush1.bf16.msra.mxu0 0
      %845 = vmatprep.subr.bf16.mxu0 0
      %846 = vmatpush1.bf16.msra.mxu0 0
      %847 = vmatprep.subr.bf16.mxu0 0
      %848 = vmatpush1.bf16.msra.mxu0 0
      %849 = vmatprep.subr.bf16.mxu0 0
      %850 = vmatpush1.bf16.msra.mxu0 0
      %851 = vmatprep.subr.bf16.mxu0 0
      %852 = vmatpush1.bf16.msra.mxu0 0
      %853 = vmatprep.subr.bf16.mxu0 0
      %854 = vmatpush1.bf16.msra.mxu0 0
      %855 = vmatprep.mubr.bf16.mxu0 %v703
      %856 = vmatmul.mubr.bf16.gmra.mrb[0].mxu0 %v647
      %v857 = vpop.f32.mrb[0].mxu0
      %v858 = vadd.f32 %v761, %v857
      %v859 = vpop.f32.mrb[0].mxu0
      %v860 = vpop.f32.mrb[0].mxu0
      %v861 = vadd.f32 %v764, %v860
      %v862 = vpop.f32.mrb[0].mxu0
      %863 = vmatprep.mubr.bf16.mxu0 %v706
      %864 = vmatmul.mubr.bf16.gmra.mrb[0].mxu0 %v651
      %v865 = vpop.f32.mrb[0].mxu0
      %v866 = vadd.f32 %v769, %v865
      %v867 = vpop.f32.mrb[0].mxu0
      %v868 = vpop.f32.mrb[0].mxu0
      %v869 = vadd.f32 %v772, %v868
      %v870 = vpop.f32.mrb[0].mxu0
      %871 = vmatprep.mubr.bf16.mxu0 %v709
      %872 = vmatmul.mubr.bf16.gmra.mrb[0].mxu0 %v655
      %v873 = vpop.f32.mrb[0].mxu0
      %v874 = vadd.f32 %v777, %v873
      %v875 = vpop.f32.mrb[0].mxu0
      %v876 = vpop.f32.mrb[0].mxu0
      %v877 = vadd.f32 %v780, %v876
      %v878 = vpop.f32.mrb[0].mxu0
      %879 = vmatprep.mubr.bf16.mxu0 %v712
      %880 = vmatmul.mubr.bf16.gmra.mrb[0].mxu0 %v659
      %v881 = vpop.f32.mrb[0].mxu0
      %v882 = vadd.f32 %v785, %v881
      %v883 = vpop.f32.mrb[0].mxu0
      %v884 = vpop.f32.mrb[0].mxu0
      %v885 = vadd.f32 %v788, %v884
      %v886 = vpop.f32.mrb[0].mxu0
      %887 = vmatprep.mubr.bf16.mxu0 %v715
      %888 = vmatmul.mubr.bf16.gmra.mrb[0].mxu0 %v663
      %v889 = vpop.f32.mrb[0].mxu0
      %v890 = vadd.f32 %v793, %v889
      %v891 = vpop.f32.mrb[0].mxu0
      %v892 = vpop.f32.mrb[0].mxu0
      %v893 = vadd.f32 %v796, %v892
      %v894 = vpop.f32.mrb[0].mxu0
      %895 = vmatprep.mubr.bf16.mxu0 %v718
      %896 = vmatmul.mubr.bf16.gmra.mrb[0].mxu0 %v667
      %v897 = vpop.f32.mrb[0].mxu0
      %v898 = vadd.f32 %v801, %v897
      %v899 = vpop.f32.mrb[0].mxu0
      %v900 = vpop.f32.mrb[0].mxu0
      %v901 = vadd.f32 %v804, %v900
      %v902 = vpop.f32.mrb[0].mxu0
      %903 = vmatprep.mubr.bf16.mxu0 %v721
      %904 = vmatmul.mubr.bf16.gmra.mrb[0].mxu0 %v671
      %v905 = vpop.f32.mrb[0].mxu0
      %v906 = vadd.f32 %v809, %v905
      %v907 = vpop.f32.mrb[0].mxu0
      %v908 = vpop.f32.mrb[0].mxu0
      %v909 = vadd.f32 %v812, %v908
      %v910 = vpop.f32.mrb[0].mxu0
      %911 = vmatprep.mubr.bf16.mxu0 %v724
      %912 = vmatmul.mubr.bf16.gmra.mrb[0].mxu0 %v675
      %v913 = vpop.f32.mrb[0].mxu0
      %v914 = vadd.f32 %v817, %v913
      %v915 = vpop.f32.mrb[0].mxu0
      %v916 = vpop.f32.mrb[0].mxu0
      %v917 = vadd.f32 %v820, %v916
      %v918 = vpop.f32.mrb[0].mxu0
      %919 = vdwg.mxu0
      %vm920 = vcmp.gt.f32.partialorder %v858, 0.0
      %vm921 = vcmp.gt.f32.partialorder %v861, 0.0
      %vm922 = vcmp.gt.f32.partialorder %v866, 0.0
      %vm923 = vcmp.gt.f32.partialorder %v869, 0.0
      %vm924 = vcmp.gt.f32.partialorder %v874, 0.0
      %vm925 = vcmp.gt.f32.partialorder %v877, 0.0
      %vm926 = vcmp.gt.f32.partialorder %v882, 0.0
      %vm927 = vcmp.gt.f32.partialorder %v885, 0.0
      %vm928 = vcmp.gt.f32.partialorder %v890, 0.0
      %vm929 = vcmp.gt.f32.partialorder %v893, 0.0
      %vm930 = vcmp.gt.f32.partialorder %v898, 0.0
      %vm931 = vcmp.gt.f32.partialorder %v901, 0.0
      %vm932 = vcmp.gt.f32.partialorder %v906, 0.0
      %vm933 = vcmp.gt.f32.partialorder %v909, 0.0
      %vm934 = vcmp.gt.f32.partialorder %v914, 0.0
      %vm935 = vcmp.gt.f32.partialorder %v917, 0.0
      %v936 = vmin.f32 %v858, 0.0
      %v937 = vmin.f32 %v861, 0.0
      %v938 = vmin.f32 %v866, 0.0
      %v939 = vmin.f32 %v869, 0.0
      %v940 = vmin.f32 %v874, 0.0
      %v941 = vmin.f32 %v877, 0.0
      %v942 = vmin.f32 %v882, 0.0
      %v943 = vmin.f32 %v885, 0.0
      %v944 = vmin.f32 %v890, 0.0
      %v945 = vmin.f32 %v893, 0.0
      %v946 = vmin.f32 %v898, 0.0
      %v947 = vmin.f32 %v901, 0.0
      %v948 = vmin.f32 %v906, 0.0
      %v949 = vmin.f32 %v909, 0.0
      %v950 = vmin.f32 %v914, 0.0
      %v951 = vmin.f32 %v917, 0.0
      %v952 = vmul.f32 %v936, 1.442695
      %v953 = vpow.pop %v952
      %v954 = vmul.f32 %v937, 1.442695
      %v955 = vpow.pop %v954
      %v956 = vmul.f32 %v938, 1.442695
      %v957 = vpow.pop %v956
      %v958 = vmul.f32 %v939, 1.442695
      %v959 = vpow.pop %v958
      %v960 = vmul.f32 %v940, 1.442695
      %v961 = vpow.pop %v960
      %v962 = vmul.f32 %v941, 1.442695
      %v963 = vpow.pop %v962
      %v964 = vmul.f32 %v942, 1.442695
      %v965 = vpow.pop %v964
      %v966 = vmul.f32 %v943, 1.442695
      %v967 = vpow.pop %v966
      %v968 = vmul.f32 %v944, 1.442695
      %v969 = vpow.pop %v968
      %v970 = vmul.f32 %v945, 1.442695
      %v971 = vpow.pop %v970
      %v972 = vmul.f32 %v946, 1.442695
      %v973 = vpow.pop %v972
      %v974 = vmul.f32 %v947, 1.442695
      %v975 = vpow.pop %v974
      %v976 = vmul.f32 %v948, 1.442695
      %v977 = vpow.pop %v976
      %v978 = vmul.f32 %v949, 1.442695
      %v979 = vpow.pop %v978
      %v980 = vmul.f32 %v950, 1.442695
      %v981 = vpow.pop %v980
      %v982 = vmul.f32 %v951, 1.442695
      %v983 = vpow.pop %v982
      %v984 = vsub.f32 %v953, 1.0
      %v985 = vsub.f32 %v955, 1.0
      %v986 = vsub.f32 %v957, 1.0
      %v987 = vsub.f32 %v959, 1.0
      %v988 = vsub.f32 %v961, 1.0
      %v989 = vsub.f32 %v963, 1.0
      %v990 = vsub.f32 %v965, 1.0
      %v991 = vsub.f32 %v967, 1.0
      %v992 = vsub.f32 %v969, 1.0
      %v993 = vsub.f32 %v971, 1.0
      %v994 = vsub.f32 %v973, 1.0
      %v995 = vsub.f32 %v975, 1.0
      %v996 = vsub.f32 %v977, 1.0
      %v997 = vsub.f32 %v979, 1.0
      %v998 = vsub.f32 %v981, 1.0
      %v999 = vsub.f32 %v983, 1.0
      %v1000 = vsel %vm920, %v858, %v984
      %v1001 = vsel %vm921, %v861, %v985
      %v1002 = vsel %vm922, %v866, %v986
      %v1003 = vsel %vm923, %v869, %v987
      %v1004 = vsel %vm924, %v874, %v988
      %v1005 = vsel %vm925, %v877, %v989
      %v1006 = vsel %vm926, %v882, %v990
      %v1007 = vsel %vm927, %v885, %v991
      %v1008 = vsel %vm928, %v890, %v992
      %v1009 = vsel %vm929, %v893, %v993
      %v1010 = vsel %vm930, %v898, %v994
      %v1011 = vsel %vm931, %v901, %v995
      %v1012 = vsel %vm932, %v906, %v996
      %v1013 = vsel %vm933, %v909, %v997
      %v1014 = vsel %vm934, %v914, %v998
      %v1015 = vsel %vm935, %v917, %v999
      %v1016 = vpack.c.bf16 %v1001, %v1000
      %v1017 = vpack.c.bf16 %v1003, %v1002
      %v1018 = vpack.c.bf16 %v1005, %v1004
      %v1019 = vpack.c.bf16 %v1007, %v1006
      %v1020 = vpack.c.bf16 %v1009, %v1008
      %v1021 = vpack.c.bf16 %v1011, %v1010
      %v1022 = vpack.c.bf16 %v1013, %v1012
      %v1023 = vpack.c.bf16 %v1015, %v1014
      %v1024 = vld [vmem:[%s3] sm:$0xf]
      %v1025 = vld [vmem:[%s3 + $0x4] sm:$0xf]
      %v1026 = vld [vmem:[%s3 + $0x8] sm:$0xf]
      %v1027 = vld [vmem:[%s3 + $0xc] sm:$0xf]
      %v1028 = vld [vmem:[%s3 + $0x10] sm:$0xf]
      %v1029 = vld [vmem:[%s3 + $0x14] sm:$0xf]
      %v1030 = vld [vmem:[%s3 + $0x18] sm:$0xf]
      %v1031 = vld [vmem:[%s3 + $0x1c] sm:$0xf]
      %v1032 = vld [vmem:[%s3 + $0x20] sm:$0xf]
      %v1033 = vld [vmem:[%s3 + $0x24] sm:$0xf]
      %v1034 = vld [vmem:[%s3 + $0x28] sm:$0xf]
      %v1035 = vld [vmem:[%s3 + $0x2c] sm:$0xf]
      %v1036 = vld [vmem:[%s3 + $0x30] sm:$0xf]
      %v1037 = vld [vmem:[%s3 + $0x34] sm:$0xf]
      %v1038 = vld [vmem:[%s3 + $0x38] sm:$0xf]
      %v1054 = vunpack.c.l.b16 %v1024
      %v1055 = vunpack.c.l.b16 %v1025
      %v1056 = vunpack.c.l.b16 %v1026
      %v1057 = vunpack.c.l.b16 %v1027
      %v1058 = vunpack.c.l.b16 %v1028
      %v1059 = vunpack.c.l.b16 %v1029
      %v1060 = vunpack.c.l.b16 %v1030
      %v1061 = vunpack.c.l.b16 %v1031
      %v1062 = vunpack.c.l.b16 %v1032
      %v1063 = vunpack.c.l.b16 %v1033
      %v1064 = vunpack.c.l.b16 %v1034
      %v1065 = vunpack.c.l.b16 %v1035
      %v1066 = vunpack.c.l.b16 %v1036
      %v1067 = vunpack.c.l.b16 %v1037
      %v1068 = vunpack.c.l.b16 %v1038
      %v1069 = vpack.c.b16 %v1055, %v1054
      %v1070 = vpack.c.b16 %v1057, %v1056
      %v1071 = vpack.c.b16 %v1059, %v1058
      %v1072 = vpack.c.b16 %v1061, %v1060
      %v1073 = vpack.c.b16 %v1063, %v1062
      %v1074 = vpack.c.b16 %v1065, %v1064
      %v1075 = vpack.c.b16 %v1067, %v1066
      %v1076 = vpack.c.b16 %v1068, %v1068
      %v1085 = vsel %vm231, %v1016, 0
      %v1088 = vsel %vm231, %v1017, 0
      %v1091 = vsel %vm231, %v1018, 0
      %v1094 = vsel %vm231, %v1019, 0
      %v1097 = vsel %vm231, %v1020, 0
      %v1100 = vsel %vm231, %v1021, 0
      %v1103 = vsel %vm231, %v1022, 0
      %v1106 = vsel %vm231, %v1023, 0
      %vm1108 = vcmask 1043456
      %v1110 = vsel %vm1108, %v1076, 0
      %1112 = vmatprep.subr.bf16.mxu0 0
      %1113 = vmatpush1.bf16.msra.mxu0 %v1069
      %1114 = vmatprep.subr.bf16.mxu0 0
      %1115 = vmatpush1.bf16.msra.mxu0 %v1070
      %1116 = vmatprep.subr.bf16.mxu0 0
      %1117 = vmatpush1.bf16.msra.mxu0 %v1071
      %1118 = vmatprep.subr.bf16.mxu0 0
      %1119 = vmatpush1.bf16.msra.mxu0 %v1072
      %1120 = vmatprep.subr.bf16.mxu0 0
      %1121 = vmatpush1.bf16.msra.mxu0 %v1073
      %1122 = vmatprep.subr.bf16.mxu0 0
      %1123 = vmatpush1.bf16.msra.mxu0 %v1074
      %1124 = vmatprep.subr.bf16.mxu0 0
      %1125 = vmatpush1.bf16.msra.mxu0 %v1075
      %1126 = vmatprep.subr.bf16.mxu0 0
      %1127 = vmatpush1.bf16.msra.mxu0 %v1110
      %1128 = vmatprep.subr.bf16.mxu0 0
      %1129 = vmatpush1.bf16.msra.mxu0 0
      %1130 = vmatprep.subr.bf16.mxu0 0
      %1131 = vmatpush1.bf16.msra.mxu0 0
      %1132 = vmatprep.subr.bf16.mxu0 0
      %1133 = vmatpush1.bf16.msra.mxu0 0
      %1134 = vmatprep.subr.bf16.mxu0 0
      %1135 = vmatpush1.bf16.msra.mxu0 0
      %1136 = vmatprep.subr.bf16.mxu0 0
      %1137 = vmatpush1.bf16.msra.mxu0 0
      %1138 = vmatprep.subr.bf16.mxu0 0
      %1139 = vmatpush1.bf16.msra.mxu0 0
      %1140 = vmatprep.subr.bf16.mxu0 0
      %1141 = vmatpush1.bf16.msra.mxu0 0
      %1142 = vmatprep.subr.bf16.mxu0 0
      %1143 = vmatpush1.bf16.msra.mxu0 0
      %1144 = vmatprep.mubr.bf16.mxu0 0
      %1145 = vmatmul.mubr.bf16.gmra.mrb[0].mxu0 %v1085
      %v1146 = vpop.f32.mrb[0].mxu0
      %v1147 = vadd.f32 0.0, %v1146
      %v1148 = vpop.f32.mrb[0].mxu0
      %v1149 = vpop.f32.mrb[0].mxu0
      %v1150 = vadd.f32 0.0, %v1149
      %v1151 = vpop.f32.mrb[0].mxu0
      %1152 = vmatprep.mubr.bf16.mxu0 0
      %1153 = vmatmul.mubr.bf16.gmra.mrb[0].mxu0 %v1088
      %v1154 = vpop.f32.mrb[0].mxu0
      %v1155 = vadd.f32 0.0, %v1154
      %v1156 = vpop.f32.mrb[0].mxu0
      %v1157 = vpop.f32.mrb[0].mxu0
      %v1158 = vadd.f32 0.0, %v1157
      %v1159 = vpop.f32.mrb[0].mxu0
      %1160 = vmatprep.mubr.bf16.mxu0 0
      %1161 = vmatmul.mubr.bf16.gmra.mrb[0].mxu0 %v1091
      %v1162 = vpop.f32.mrb[0].mxu0
      %v1163 = vadd.f32 0.0, %v1162
      %v1164 = vpop.f32.mrb[0].mxu0
      %v1165 = vpop.f32.mrb[0].mxu0
      %v1166 = vadd.f32 0.0, %v1165
      %v1167 = vpop.f32.mrb[0].mxu0
      %1168 = vmatprep.mubr.bf16.mxu0 0
      %1169 = vmatmul.mubr.bf16.gmra.mrb[0].mxu0 %v1094
      %v1170 = vpop.f32.mrb[0].mxu0
      %v1171 = vadd.f32 0.0, %v1170
      %v1172 = vpop.f32.mrb[0].mxu0
      %v1173 = vpop.f32.mrb[0].mxu0
      %v1174 = vadd.f32 0.0, %v1173
      %v1175 = vpop.f32.mrb[0].mxu0
      %1176 = vmatprep.mubr.bf16.mxu0 0
      %1177 = vmatmul.mubr.bf16.gmra.mrb[0].mxu0 %v1097
      %v1178 = vpop.f32.mrb[0].mxu0
      %v1179 = vadd.f32 0.0, %v1178
      %v1180 = vpop.f32.mrb[0].mxu0
      %v1181 = vpop.f32.mrb[0].mxu0
      %v1182 = vadd.f32 0.0, %v1181
      %v1183 = vpop.f32.mrb[0].mxu0
      %1184 = vmatprep.mubr.bf16.mxu0 0
      %1185 = vmatmul.mubr.bf16.gmra.mrb[0].mxu0 %v1100
      %v1186 = vpop.f32.mrb[0].mxu0
      %v1187 = vadd.f32 0.0, %v1186
      %v1188 = vpop.f32.mrb[0].mxu0
      %v1189 = vpop.f32.mrb[0].mxu0
      %v1190 = vadd.f32 0.0, %v1189
      %v1191 = vpop.f32.mrb[0].mxu0
      %1192 = vmatprep.mubr.bf16.mxu0 0
      %1193 = vmatmul.mubr.bf16.gmra.mrb[0].mxu0 %v1103
      %v1194 = vpop.f32.mrb[0].mxu0
      %v1195 = vadd.f32 0.0, %v1194
      %v1196 = vpop.f32.mrb[0].mxu0
      %v1197 = vpop.f32.mrb[0].mxu0
      %v1198 = vadd.f32 0.0, %v1197
      %v1199 = vpop.f32.mrb[0].mxu0
      %1200 = vmatprep.mubr.bf16.mxu0 0
      %1201 = vmatmul.mubr.bf16.gmra.mrb[0].mxu0 %v1106
      %v1202 = vpop.f32.mrb[0].mxu0
      %v1203 = vadd.f32 0.0, %v1202
      %v1204 = vpop.f32.mrb[0].mxu0
      %v1205 = vpop.f32.mrb[0].mxu0
      %v1206 = vadd.f32 0.0, %v1205
      %v1207 = vpop.f32.mrb[0].mxu0
      %1208 = vdwg.mxu0
      %v1209 = vld [vmem:[%s4] sm:$0xf]
      %v1210 = vld [vmem:[%s4 + $0x4] sm:$0xf]
      %v1211 = vld [vmem:[%s4 + $0x8] sm:$0xf]
      %v1212 = vld [vmem:[%s4 + $0xc] sm:$0xf]
      %v1213 = vld [vmem:[%s4 + $0x10] sm:$0xf]
      %v1214 = vld [vmem:[%s4 + $0x14] sm:$0xf]
      %v1215 = vld [vmem:[%s4 + $0x18] sm:$0xf]
      %v1216 = vld [vmem:[%s4 + $0x1c] sm:$0xf]
      %v1217 = vld [vmem:[%s4 + $0x20] sm:$0xf]
      %v1218 = vld [vmem:[%s4 + $0x24] sm:$0xf]
      %v1219 = vld [vmem:[%s4 + $0x28] sm:$0xf]
      %v1220 = vld [vmem:[%s4 + $0x2c] sm:$0xf]
      %v1221 = vld [vmem:[%s4 + $0x30] sm:$0xf]
      %v1222 = vld [vmem:[%s4 + $0x34] sm:$0xf]
      %v1223 = vld [vmem:[%s4 + $0x38] sm:$0xf]
      %v1224 = vld [vmem:[%s4 + $0x3c] sm:$0xf]
      %v1225 = vpack.c.bf16 %v1150, %v1147
      %v1226 = vpack.c.bf16 %v1158, %v1155
      %v1227 = vpack.c.bf16 %v1166, %v1163
      %v1228 = vpack.c.bf16 %v1174, %v1171
      %v1229 = vpack.c.bf16 %v1182, %v1179
      %v1230 = vpack.c.bf16 %v1190, %v1187
      %v1231 = vpack.c.bf16 %v1198, %v1195
      %v1232 = vpack.c.bf16 %v1206, %v1203
      %1233 = vset.pattern.permute.xlu0 1
      %1234 = vperm.xlu0 %1233, %v453
      %v1235 = vpop.permute.xlu0 %1234
      %1237 = vset.pattern.permute.xlu0 1
      %1238 = vperm.xlu0 %1237, %v454
      %v1239 = vpop.permute.xlu0 %1238
      %1241 = vset.pattern.permute.xlu0 1
      %1242 = vperm.xlu0 %1241, %v455
      %v1243 = vpop.permute.xlu0 %1242
      %1245 = vset.pattern.permute.xlu0 1
      %1246 = vperm.xlu0 %1245, %v456
      %v1247 = vpop.permute.xlu0 %1246
      %1249 = vset.pattern.permute.xlu0 1
      %1250 = vperm.xlu0 %1249, %v457
      %v1251 = vpop.permute.xlu0 %1250
      %1253 = vset.pattern.permute.xlu0 1
      %1254 = vperm.xlu0 %1253, %v458
      %v1255 = vpop.permute.xlu0 %1254
      %1257 = vset.pattern.permute.xlu0 1
      %1258 = vperm.xlu0 %1257, %v459
      %v1259 = vpop.permute.xlu0 %1258
      %1261 = vset.pattern.permute.xlu0 1
      %1262 = vperm.xlu0 %1261, %v460
      %v1263 = vpop.permute.xlu0 %1262
      %1265 = vset.pattern.permute.xlu0 1
      %1266 = vperm.xlu0 %1265, %v461
      %v1267 = vpop.permute.xlu0 %1266
      %1269 = vset.pattern.permute.xlu0 1
      %1270 = vperm.xlu0 %1269, %v462
      %v1271 = vpop.permute.xlu0 %1270
      %1273 = vset.pattern.permute.xlu0 1
      %1274 = vperm.xlu0 %1273, %v463
      %v1275 = vpop.permute.xlu0 %1274
      %1277 = vset.pattern.permute.xlu0 1
      %1278 = vperm.xlu0 %1277, %v464
      %v1279 = vpop.permute.xlu0 %1278
      %1281 = vset.pattern.permute.xlu0 1
      %1282 = vperm.xlu0 %1281, %v465
      %v1283 = vpop.permute.xlu0 %1282
      %1285 = vset.pattern.permute.xlu0 1
      %1286 = vperm.xlu0 %1285, %v466
      %v1287 = vpop.permute.xlu0 %1286
      %1289 = vset.pattern.permute.xlu0 1
      %1290 = vperm.xlu0 %1289, %v467
      %v1291 = vpop.permute.xlu0 %1290
      %1293 = vset.pattern.permute.xlu0 1
      %1294 = vperm.xlu0 %1293, %v468
      %v1295 = vpop.permute.xlu0 %1294
      %v1313 = vunpack.c.l.b16 %v1209
      %v1314 = vunpack.c.l.b16 %v1210
      %v1315 = vunpack.c.l.b16 %v1211
      %v1316 = vunpack.c.l.b16 %v1212
      %v1317 = vunpack.c.l.b16 %v1213
      %v1318 = vunpack.c.l.b16 %v1214
      %v1319 = vunpack.c.l.b16 %v1215
      %v1320 = vunpack.c.l.b16 %v1216
      %v1321 = vunpack.c.l.b16 %v1217
      %v1322 = vunpack.c.l.b16 %v1218
      %v1323 = vunpack.c.l.b16 %v1219
      %v1324 = vunpack.c.l.b16 %v1220
      %v1325 = vunpack.c.l.b16 %v1221
      %v1326 = vunpack.c.l.b16 %v1222
      %v1327 = vunpack.c.l.b16 %v1223
      %v1328 = vunpack.c.l.b16 %v1224
      %v1329 = vpack.c.b16 %v1314, %v1313
      %v1330 = vpack.c.b16 %v1316, %v1315
      %v1331 = vpack.c.b16 %v1318, %v1317
      %v1332 = vpack.c.b16 %v1320, %v1319
      %v1333 = vpack.c.b16 %v1322, %v1321
      %v1334 = vpack.c.b16 %v1324, %v1323
      %v1335 = vpack.c.b16 %v1326, %v1325
      %v1336 = vpack.c.b16 %v1328, %v1327
      %1345 = vmatprep.subr.bf16.mxu0 0
      %1346 = vmatpush1.bf16.msra.mxu0 %v1225
      %1347 = vmatprep.subr.bf16.mxu0 0
      %1348 = vmatpush1.bf16.msra.mxu0 %v1226
      %1349 = vmatprep.subr.bf16.mxu0 0
      %1350 = vmatpush1.bf16.msra.mxu0 %v1227
      %1351 = vmatprep.subr.bf16.mxu0 0
      %1352 = vmatpush1.bf16.msra.mxu0 %v1228
      %1353 = vmatprep.subr.bf16.mxu0 0
      %1354 = vmatpush1.bf16.msra.mxu0 %v1229
      %1355 = vmatprep.subr.bf16.mxu0 0
      %1356 = vmatpush1.bf16.msra.mxu0 %v1230
      %1357 = vmatprep.subr.bf16.mxu0 0
      %1358 = vmatpush1.bf16.msra.mxu0 %v1231
      %1359 = vmatprep.subr.bf16.mxu0 0
      %1360 = vmatpush1.bf16.msra.mxu0 %v1232
      %1361 = vmatprep.subr.bf16.mxu0 0
      %1362 = vmatpush1.bf16.msra.mxu0 0
      %1363 = vmatprep.subr.bf16.mxu0 0
      %1364 = vmatpush1.bf16.msra.mxu0 0
      %1365 = vmatprep.subr.bf16.mxu0 0
      %1366 = vmatpush1.bf16.msra.mxu0 0
      %1367 = vmatprep.subr.bf16.mxu0 0
      %1368 = vmatpush1.bf16.msra.mxu0 0
      %1369 = vmatprep.subr.bf16.mxu0 0
      %1370 = vmatpush1.bf16.msra.mxu0 0
      %1371 = vmatprep.subr.bf16.mxu0 0
      %1372 = vmatpush1.bf16.msra.mxu0 0
      %1373 = vmatprep.subr.bf16.mxu0 0
      %1374 = vmatpush1.bf16.msra.mxu0 0
      %1375 = vmatprep.subr.bf16.mxu0 0
      %1376 = vmatpush1.bf16.msra.mxu0 0
      %1377 = vmatprep.mubr.bf16.mxu0 0
      %1378 = vmatmul.mubr.bf16.gmra.mrb[0].mxu0 %v1329
      %v1379 = vpop.f32.mrb[0].mxu0
      %v1380 = vadd.f32 %v1235, %v1379
      %v1381 = vpop.f32.mrb[0].mxu0
      %v1382 = vpop.f32.mrb[0].mxu0
      %v1383 = vadd.f32 %v1239, %v1382
      %v1384 = vpop.f32.mrb[0].mxu0
      %1385 = vmatprep.mubr.bf16.mxu0 0
      %1386 = vmatmul.mubr.bf16.gmra.mrb[0].mxu0 %v1330
      %v1387 = vpop.f32.mrb[0].mxu0
      %v1388 = vadd.f32 %v1243, %v1387
      %v1389 = vpop.f32.mrb[0].mxu0
      %v1390 = vpop.f32.mrb[0].mxu0
      %v1391 = vadd.f32 %v1247, %v1390
      %v1392 = vpop.f32.mrb[0].mxu0
      %1393 = vmatprep.mubr.bf16.mxu0 0
      %1394 = vmatmul.mubr.bf16.gmra.mrb[0].mxu0 %v1331
      %v1395 = vpop.f32.mrb[0].mxu0
      %v1396 = vadd.f32 %v1251, %v1395
      %v1397 = vpop.f32.mrb[0].mxu0
      %v1398 = vpop.f32.mrb[0].mxu0
      %v1399 = vadd.f32 %v1255, %v1398
      %v1400 = vpop.f32.mrb[0].mxu0
      %1401 = vmatprep.mubr.bf16.mxu0 0
      %1402 = vmatmul.mubr.bf16.gmra.mrb[0].mxu0 %v1332
      %v1403 = vpop.f32.mrb[0].mxu0
      %v1404 = vadd.f32 %v1259, %v1403
      %v1405 = vpop.f32.mrb[0].mxu0
      %v1406 = vpop.f32.mrb[0].mxu0
      %v1407 = vadd.f32 %v1263, %v1406
      %v1408 = vpop.f32.mrb[0].mxu0
      %1409 = vmatprep.mubr.bf16.mxu0 0
      %1410 = vmatmul.mubr.bf16.gmra.mrb[0].mxu0 %v1333
      %v1411 = vpop.f32.mrb[0].mxu0
      %v1412 = vadd.f32 %v1267, %v1411
      %v1413 = vpop.f32.mrb[0].mxu0
      %v1414 = vpop.f32.mrb[0].mxu0
      %v1415 = vadd.f32 %v1271, %v1414
      %v1416 = vpop.f32.mrb[0].mxu0
      %1417 = vmatprep.mubr.bf16.mxu0 0
      %1418 = vmatmul.mubr.bf16.gmra.mrb[0].mxu0 %v1334
      %v1419 = vpop.f32.mrb[0].mxu0
      %v1420 = vadd.f32 %v1275, %v1419
      %v1421 = vpop.f32.mrb[0].mxu0
      %v1422 = vpop.f32.mrb[0].mxu0
      %v1423 = vadd.f32 %v1279, %v1422
      %v1424 = vpop.f32.mrb[0].mxu0
      %1425 = vmatprep.mubr.bf16.mxu0 0
      %1426 = vmatmul.mubr.bf16.gmra.mrb[0].mxu0 %v1335
      %v1427 = vpop.f32.mrb[0].mxu0
      %v1428 = vadd.f32 %v1283, %v1427
      %v1429 = vpop.f32.mrb[0].mxu0
      %v1430 = vpop.f32.mrb[0].mxu0
      %v1431 = vadd.f32 %v1287, %v1430
      %v1432 = vpop.f32.mrb[0].mxu0
      %1433 = vmatprep.mubr.bf16.mxu0 0
      %1434 = vmatmul.mubr.bf16.gmra.mrb[0].mxu0 %v1336
      %v1435 = vpop.f32.mrb[0].mxu0
      %v1436 = vadd.f32 %v1291, %v1435
      %v1437 = vpop.f32.mrb[0].mxu0
      %v1438 = vpop.f32.mrb[0].mxu0
      %v1439 = vadd.f32 %v1295, %v1438
      %v1440 = vpop.f32.mrb[0].mxu0
      %1441 = vdwg.mxu0
      %vm1442 = vcmask 15360
      %1443 = vst.msk [vmem:[%s224] sm:$0xff] %vm1442, %v1380
      %1444 = vst.msk [vmem:[%s224 + $0x8] sm:$0xff] %vm1442, %v1383
      %1445 = vst.msk [vmem:[%s224 + $0x10] sm:$0xff] %vm1442, %v1388
      %1446 = vst.msk [vmem:[%s224 + $0x18] sm:$0xff] %vm1442, %v1391
      %1447 = vst.msk [vmem:[%s224 + $0x20] sm:$0xff] %vm1442, %v1396
      %1448 = vst.msk [vmem:[%s224 + $0x28] sm:$0xff] %vm1442, %v1399
      %1449 = vst.msk [vmem:[%s224 + $0x30] sm:$0xff] %vm1442, %v1404
      %1450 = vst.msk [vmem:[%s224 + $0x38] sm:$0xff] %vm1442, %v1407
      %1451 = vst.msk [vmem:[%s224 + $0x40] sm:$0xff] %vm1442, %v1412
      %1452 = vst.msk [vmem:[%s224 + $0x48] sm:$0xff] %vm1442, %v1415
      %1453 = vst.msk [vmem:[%s224 + $0x50] sm:$0xff] %vm1442, %v1420
      %1454 = vst.msk [vmem:[%s224 + $0x58] sm:$0xff] %vm1442, %v1423
      %1455 = vst.msk [vmem:[%s224 + $0x60] sm:$0xff] %vm1442, %v1428
      %1456 = vst.msk [vmem:[%s224 + $0x68] sm:$0xff] %vm1442, %v1431
      %1457 = vst.msk [vmem:[%s224 + $0x70] sm:$0xff] %vm1442, %v1436
      %1458 = vst.msk [vmem:[%s224 + $0x78] sm:$0xff] %vm1442, %v1439
      %p1459 = scmp.lt.s32.totalorder %s16, 1
      %s1460 = scalar_select %p1459, %s16, 1
      %s1461 = smul.addr %s1460, 16
      %s1462 = smul.addr %s1461, 8
      %s1463 = scalar_lea.vmem %s5, %s1462
      // Predicated region
      $region41: #{tpu_custom_call.1} parent=39 // pred_check
        %p1464 = pneg %p144
      $region42: #{tpu_custom_call.1} parent=39 // pred_check_branch
        %1466 = sbr.rel (%p1464) target = $region44
      $region43: #{tpu_custom_call.1} parent=39 // pred_region
        _
      $region44: #{tpu_custom_call.1} parent=39 // pred_fallthru
        _
    $region40: #{tpu_custom_call.1} parent=5 // pred_fallthru
      _
    %p1467 = scmp.le.s32.totalorder 2, %s11
    // Predicated region
    $region45: #{tpu_custom_call.1} parent=5 // pred_check
      %p1468 = pneg %p1467
    $region46: #{tpu_custom_call.1} parent=5 // pred_check_branch
      %1470 = sbr.rel (%p1468) target = $region48
    $region47: #{tpu_custom_call.1} parent=5 // pred_region
      %s1471 = ssub.s32 %s11, 2
      // Predicated region
      $region49: #{tpu_custom_call.1} parent=47 // pred_check
        %p1472 = pneg %p150
      $region50: #{tpu_custom_call.1} parent=47 // pred_check_branch
        %1474 = sbr.rel (%p1472) target = $region52
      $region51: #{tpu_custom_call.1} parent=47 // pred_region
        %p1475 = scmp.lt.s32.totalorder %s17, 1
        %s1476 = scalar_select %p1475, %s17, 1
        %s1477 = smul.addr %s1476, 16
        %s1478 = smul.addr %s1477, 8
        %s1479 = scalar_lea.vmem %s5, %s1478
      $region52: #{tpu_custom_call.1} parent=47 // pred_fallthru
        _
    $region48: #{tpu_custom_call.1} parent=5 // pred_fallthru
      _
  $region6: #{tpu_custom_call.1} parent=0 // loop_footer
    %s15 = sadd.s32 1, %s11
  $region7: #{tpu_custom_call.1} parent=0 // loop_footer_branch
    %10 = sbr.rel target = $region3
  $region8: #{tpu_custom_call.1} parent=0 // loop_exit
    _

</llo_original>
